<compile_context>
chip_gen: v7x
topology: tpu7x:2x2x1
jax: 0.10.0
libtpu: 0.0.40
codegen_flags: <defaults>
</compile_context>

<pallas_src>
import jax
import jax.numpy as jnp
from jax.experimental import pallas as pl
from jax.experimental.pallas import tpu as pltpu

INPUT_SIZE = 28 * 28          # 784
INPUT_PAD = 896               # 7 * 128  (lane-aligned K for the first matmul)
HIDDEN_SIZE = 256
OUTPUT_SIZE = 10
OUTPUT_PAD = 128              # lane-dense output (unmasked stores / full-width DMA)
TILE_B = 128                  # batch rows per grid step (v5e-safe; fills MXU M dim)


def mlp_kernel(x_ref,
               w1_ref, b1_ref,
               w2_ref, b2_ref,
               w3_ref, b3_ref,
               w4_ref, b4_ref,
               o_ref):
    # All matmuls on the MXU in bf16 with f32 accumulation; bias+ReLU on the VPU.
    h = jnp.dot(x_ref[...], w1_ref[...], preferred_element_type=jnp.float32)
    h = jnp.maximum(h + b1_ref[...], 0.0).astype(jnp.bfloat16)

    h = jnp.dot(h, w2_ref[...], preferred_element_type=jnp.float32)
    h = jnp.maximum(h + b2_ref[...], 0.0).astype(jnp.bfloat16)

    h = jnp.dot(h, w3_ref[...], preferred_element_type=jnp.float32)
    h = jnp.maximum(h + b3_ref[...], 0.0).astype(jnp.bfloat16)

    out = jnp.dot(h, w4_ref[...], preferred_element_type=jnp.float32) + b4_ref[...]
    o_ref[...] = out.astype(o_ref.dtype)


def network_relu_forward(x, kernel_params):
    """x: [B, 784] float32.  kernel_params: output of prepare_params()."""
    B = x.shape[0]
    w1, b1 = kernel_params["fc1"]
    w2, b2 = kernel_params["fc2"]
    w3, b3 = kernel_params["fc3"]
    w4, b4 = kernel_params["fc4"]

    # Pad batch to a multiple of TILE_B and features to INPUT_PAD (zeros), bf16.
    b_pad = (-B) % TILE_B
    x_p = jnp.pad(x, ((0, b_pad), (0, INPUT_PAD - INPUT_SIZE))).astype(jnp.bfloat16)
    B_pad = B + b_pad
    grid = (pl.cdiv(B_pad, TILE_B),)

    # Weights/biases: constant block index -> resident in VMEM across grid steps.
    def const_spec(shape):
        return pl.BlockSpec(shape, lambda i: (0, 0))

    out_padded = pl.pallas_call(
        mlp_kernel,
        out_shape=jax.ShapeDtypeStruct((B_pad, OUTPUT_PAD), jnp.float32),
        grid=grid,
        in_specs=[
            pl.BlockSpec((TILE_B, INPUT_PAD), lambda i: (i, 0)),   # x (row-tiled)
            const_spec((INPUT_PAD, HIDDEN_SIZE)),  const_spec((1, HIDDEN_SIZE)),
            const_spec((HIDDEN_SIZE, HIDDEN_SIZE)), const_spec((1, HIDDEN_SIZE)),
            const_spec((HIDDEN_SIZE, HIDDEN_SIZE)), const_spec((1, HIDDEN_SIZE)),
            const_spec((HIDDEN_SIZE, OUTPUT_PAD)),  const_spec((1, OUTPUT_PAD)),
        ],
        out_specs=pl.BlockSpec((TILE_B, OUTPUT_PAD), lambda i: (i, 0)),
        compiler_params=pltpu.CompilerParams(
            dimension_semantics=("parallel",),   # v7x: shard batch tiles across 2 TCs
            vmem_limit_bytes=16 << 20,           # honest footprint; fits v7x VMEM
        ),
    )(x_p, w1, b1, w2, b2, w3, b3, w4, b4)

    return out_padded[:B, :OUTPUT_SIZE]


def init_params(key):
    """Deterministic init mimicking PyTorch nn.Linear default:
    uniform(-1/sqrt(fan_in), 1/sqrt(fan_in)) for both weight and bias.
    Weights stored pre-transposed as [in, out] (x @ W == x @ weight.T)."""
    sizes = [
        ("fc1", INPUT_SIZE, HIDDEN_SIZE),
        ("fc2", HIDDEN_SIZE, HIDDEN_SIZE),
        ("fc3", HIDDEN_SIZE, HIDDEN_SIZE),
        ("fc4", HIDDEN_SIZE, OUTPUT_SIZE),
    ]
    params = {}
    for name, fan_in, fan_out in sizes:
        key, kw, kb = jax.random.split(key, 3)
        bound = 1.0 / (fan_in ** 0.5)
        w_t = jax.random.uniform(kw, (fan_in, fan_out), jnp.float32, -bound, bound)
        b = jax.random.uniform(kb, (1, fan_out), jnp.float32, -bound, bound)
        params[name] = (w_t, b)
    return params


def prepare_params(params):
    """Zero-pad fc1 K dim (784->896) and fc4 N dim (10->128); cast weights to bf16.
    Padded rows/lanes are zero so they contribute nothing / are sliced off."""
    w1, b1 = params["fc1"]
    w1p = jnp.zeros((INPUT_PAD, HIDDEN_SIZE), jnp.float32).at[:INPUT_SIZE, :].set(w1)

    w4, b4 = params["fc4"]
    w4p = jnp.zeros((HIDDEN_SIZE, OUTPUT_PAD), jnp.float32).at[:, :OUTPUT_SIZE].set(w4)
    b4p = jnp.zeros((1, OUTPUT_PAD), jnp.float32).at[:, :OUTPUT_SIZE].set(b4)

    return {
        "fc1": (w1p.astype(jnp.bfloat16), b1),
        "fc2": (params["fc2"][0].astype(jnp.bfloat16), params["fc2"][1]),
        "fc3": (params["fc3"][0].astype(jnp.bfloat16), params["fc3"][1]),
        "fc4": (w4p.astype(jnp.bfloat16), b4p),
    }


def reference_forward(x, params):
    """Plain-JAX reference mirroring the kernel's precision recipe
    (bf16 operands, f32 accumulation, f32 bias+ReLU; dropout = identity)."""
    h = x.astype(jnp.bfloat16)
    for name in ("fc1", "fc2", "fc3"):
        w, b = params[name]
        h = jnp.dot(h, w.astype(jnp.bfloat16), preferred_element_type=jnp.float32) + b
        h = jnp.maximum(h, 0.0).astype(jnp.bfloat16)
    w, b = params["fc4"]
    return jnp.dot(h, w.astype(jnp.bfloat16), preferred_element_type=jnp.float32) + b


if __name__ == "__main__":
    key = jax.random.PRNGKey(0)
    key, kx = jax.random.split(key)

    batch = 8
    x = jax.random.normal(kx, (batch, INPUT_SIZE), jnp.float32)
    params = init_params(key)
    kparams = prepare_params(params)

    out = network_relu_forward(x, kparams)
    out = jax.block_until_ready(out)

    ref = reference_forward(x, params)
    assert out.shape == (batch, OUTPUT_SIZE), out.shape
    assert jnp.allclose(out, ref, atol=2e-3, rtol=2e-3), "mismatch vs reference"

    print("KERNEL_OK")
</pallas_src>

<mosaic_0001>
module attributes {stable_mosaic.version = 11 : i64} {
  func.func @mlp_kernel(%arg0: i32, %arg1: memref<128x896xbf16, #tpu.memory_space<vmem>>, %arg2: memref<896x256xbf16, #tpu.memory_space<vmem>>, %arg3: memref<1x256xf32, #tpu.memory_space<vmem>>, %arg4: memref<256x256xbf16, #tpu.memory_space<vmem>>, %arg5: memref<1x256xf32, #tpu.memory_space<vmem>>, %arg6: memref<256x256xbf16, #tpu.memory_space<vmem>>, %arg7: memref<1x256xf32, #tpu.memory_space<vmem>>, %arg8: memref<256x128xbf16, #tpu.memory_space<vmem>>, %arg9: memref<1x128xf32, #tpu.memory_space<vmem>>, %arg10: memref<128x128xf32, #tpu.memory_space<vmem>>) attributes {dimension_semantics = [#tpu.dimension_semantics<parallel>], iteration_bounds = array<i64: 1>, scalar_prefetch = 0 : i64, scratch_operands = 0 : i64, tpu.core_type = #tpu.core_type<tc>, window_params = [{transform_indices = @transform_0, window_bounds = array<i64: 128, 896>}, {pipeline_mode = #tpu.pipeline_mode<synchronous>, transform_indices = @transform_1, window_bounds = array<i64: 896, 256>}, {pipeline_mode = #tpu.pipeline_mode<synchronous>, transform_indices = @transform_2, window_bounds = array<i64: 1, 256>}, {pipeline_mode = #tpu.pipeline_mode<synchronous>, transform_indices = @transform_3, window_bounds = array<i64: 256, 256>}, {pipeline_mode = #tpu.pipeline_mode<synchronous>, transform_indices = @transform_4, window_bounds = array<i64: 1, 256>}, {pipeline_mode = #tpu.pipeline_mode<synchronous>, transform_indices = @transform_5, window_bounds = array<i64: 256, 256>}, {pipeline_mode = #tpu.pipeline_mode<synchronous>, transform_indices = @transform_6, window_bounds = array<i64: 1, 256>}, {pipeline_mode = #tpu.pipeline_mode<synchronous>, transform_indices = @transform_7, window_bounds = array<i64: 256, 128>}, {pipeline_mode = #tpu.pipeline_mode<synchronous>, transform_indices = @transform_8, window_bounds = array<i64: 1, 128>}, {transform_indices = @transform_9, window_bounds = array<i64: 128, 128>}]} {
    %c0 = arith.constant 0 : index
    %c0_0 = arith.constant 0 : index
    %0 = vector.load %arg1[%c0, %c0_0] : memref<128x896xbf16, #tpu.memory_space<vmem>>, vector<128x896xbf16>
    %c0_1 = arith.constant 0 : index
    %c0_2 = arith.constant 0 : index
    %1 = vector.load %arg2[%c0_1, %c0_2] : memref<896x256xbf16, #tpu.memory_space<vmem>>, vector<896x256xbf16>
    %cst = arith.constant dense<0.000000e+00> : vector<128x256xf32>
    %2 = tpu.matmul %0, %1, %cst {dimension_numbers = #tpu.dot_dimension_numbers<[1], [0], [0], [1], [0, 0, 1, 1], [], []>} : vector<128x896xbf16>, vector<896x256xbf16>, vector<128x256xf32> -> vector<128x256xf32>
    %c0_3 = arith.constant 0 : index
    %c0_4 = arith.constant 0 : index
    %3 = vector.load %arg3[%c0_3, %c0_4] : memref<1x256xf32, #tpu.memory_space<vmem>>, vector<1x256xf32>
    %4 = vector.broadcast %3 : vector<1x256xf32> to vector<128x256xf32>
    %5 = arith.addf %2, %4 : vector<128x256xf32>
    %cst_5 = arith.constant 0.000000e+00 : f32
    %6 = vector.broadcast %cst_5 : f32 to vector<128x256xf32>
    %7 = arith.maximumf %5, %6 : vector<128x256xf32>
    %8 = arith.truncf %7 : vector<128x256xf32> to vector<128x256xbf16>
    %c0_6 = arith.constant 0 : index
    %c0_7 = arith.constant 0 : index
    %9 = vector.load %arg4[%c0_6, %c0_7] : memref<256x256xbf16, #tpu.memory_space<vmem>>, vector<256x256xbf16>
    %cst_8 = arith.constant dense<0.000000e+00> : vector<128x256xf32>
    %10 = tpu.matmul %8, %9, %cst_8 {dimension_numbers = #tpu.dot_dimension_numbers<[1], [0], [0], [1], [0, 0, 1, 1], [], []>} : vector<128x256xbf16>, vector<256x256xbf16>, vector<128x256xf32> -> vector<128x256xf32>
    %c0_9 = arith.constant 0 : index
    %c0_10 = arith.constant 0 : index
    %11 = vector.load %arg5[%c0_9, %c0_10] : memref<1x256xf32, #tpu.memory_space<vmem>>, vector<1x256xf32>
    %12 = vector.broadcast %11 : vector<1x256xf32> to vector<128x256xf32>
    %13 = arith.addf %10, %12 : vector<128x256xf32>
    %cst_11 = arith.constant 0.000000e+00 : f32
    %14 = vector.broadcast %cst_11 : f32 to vector<128x256xf32>
    %15 = arith.maximumf %13, %14 : vector<128x256xf32>
    %16 = arith.truncf %15 : vector<128x256xf32> to vector<128x256xbf16>
    %c0_12 = arith.constant 0 : index
    %c0_13 = arith.constant 0 : index
    %17 = vector.load %arg6[%c0_12, %c0_13] : memref<256x256xbf16, #tpu.memory_space<vmem>>, vector<256x256xbf16>
    %cst_14 = arith.constant dense<0.000000e+00> : vector<128x256xf32>
    %18 = tpu.matmul %16, %17, %cst_14 {dimension_numbers = #tpu.dot_dimension_numbers<[1], [0], [0], [1], [0, 0, 1, 1], [], []>} : vector<128x256xbf16>, vector<256x256xbf16>, vector<128x256xf32> -> vector<128x256xf32>
    %c0_15 = arith.constant 0 : index
    %c0_16 = arith.constant 0 : index
    %19 = vector.load %arg7[%c0_15, %c0_16] : memref<1x256xf32, #tpu.memory_space<vmem>>, vector<1x256xf32>
    %20 = vector.broadcast %19 : vector<1x256xf32> to vector<128x256xf32>
    %21 = arith.addf %18, %20 : vector<128x256xf32>
    %cst_17 = arith.constant 0.000000e+00 : f32
    %22 = vector.broadcast %cst_17 : f32 to vector<128x256xf32>
    %23 = arith.maximumf %21, %22 : vector<128x256xf32>
    %24 = arith.truncf %23 : vector<128x256xf32> to vector<128x256xbf16>
    %c0_18 = arith.constant 0 : index
    %c0_19 = arith.constant 0 : index
    %25 = vector.load %arg8[%c0_18, %c0_19] : memref<256x128xbf16, #tpu.memory_space<vmem>>, vector<256x128xbf16>
    %cst_20 = arith.constant dense<0.000000e+00> : vector<128x128xf32>
    %26 = tpu.matmul %24, %25, %cst_20 {dimension_numbers = #tpu.dot_dimension_numbers<[1], [0], [0], [1], [0, 0, 1, 1], [], []>} : vector<128x256xbf16>, vector<256x128xbf16>, vector<128x128xf32> -> vector<128x128xf32>
    %c0_21 = arith.constant 0 : index
    %c0_22 = arith.constant 0 : index
    %27 = vector.load %arg9[%c0_21, %c0_22] : memref<1x128xf32, #tpu.memory_space<vmem>>, vector<1x128xf32>
    %28 = vector.broadcast %27 : vector<1x128xf32> to vector<128x128xf32>
    %29 = arith.addf %26, %28 : vector<128x128xf32>
    %c0_23 = arith.constant 0 : index
    %c0_24 = arith.constant 0 : index
    %30 = vector.load %arg10[%c0_23, %c0_24] : memref<128x128xf32, #tpu.memory_space<vmem>>, vector<128x128xf32>
    tpu.vector_store %arg10[%c0_23, %c0_24], %29 {strides = array<i32>} : memref<128x128xf32, #tpu.memory_space<vmem>>, vector<128x128xf32>,
    return
  }
  func.func @transform_0(%arg0: i32) -> (i32, i32) {
    %c0_i32 = arith.constant 0 : i32
    %c0_i32_0 = arith.constant 0 : i32
    return %arg0, %c0_i32 : i32, i32
  }
  func.func @transform_1(%arg0: i32) -> (i32, i32) {
    %c0_i32 = arith.constant 0 : i32
    %c0_i32_0 = arith.constant 0 : i32
    %c0_i32_1 = arith.constant 0 : i32
    return %c0_i32, %c0_i32_0 : i32, i32
  }
  func.func @transform_2(%arg0: i32) -> (i32, i32) {
    %c0_i32 = arith.constant 0 : i32
    %c0_i32_0 = arith.constant 0 : i32
    %c0_i32_1 = arith.constant 0 : i32
    return %c0_i32, %c0_i32_0 : i32, i32
  }
  func.func @transform_3(%arg0: i32) -> (i32, i32) {
    %c0_i32 = arith.constant 0 : i32
    %c0_i32_0 = arith.constant 0 : i32
    %c0_i32_1 = arith.constant 0 : i32
    return %c0_i32, %c0_i32_0 : i32, i32
  }
  func.func @transform_4(%arg0: i32) -> (i32, i32) {
    %c0_i32 = arith.constant 0 : i32
    %c0_i32_0 = arith.constant 0 : i32
    %c0_i32_1 = arith.constant 0 : i32
    return %c0_i32, %c0_i32_0 : i32, i32
  }
  func.func @transform_5(%arg0: i32) -> (i32, i32) {
    %c0_i32 = arith.constant 0 : i32
    %c0_i32_0 = arith.constant 0 : i32
    %c0_i32_1 = arith.constant 0 : i32
    return %c0_i32, %c0_i32_0 : i32, i32
  }
  func.func @transform_6(%arg0: i32) -> (i32, i32) {
    %c0_i32 = arith.constant 0 : i32
    %c0_i32_0 = arith.constant 0 : i32
    %c0_i32_1 = arith.constant 0 : i32
    return %c0_i32, %c0_i32_0 : i32, i32
  }
  func.func @transform_7(%arg0: i32) -> (i32, i32) {
    %c0_i32 = arith.constant 0 : i32
    %c0_i32_0 = arith.constant 0 : i32
    %c0_i32_1 = arith.constant 0 : i32
    return %c0_i32, %c0_i32_0 : i32, i32
  }
  func.func @transform_8(%arg0: i32) -> (i32, i32) {
    %c0_i32 = arith.constant 0 : i32
    %c0_i32_0 = arith.constant 0 : i32
    %c0_i32_1 = arith.constant 0 : i32
    return %c0_i32, %c0_i32_0 : i32, i32
  }
  func.func @transform_9(%arg0: i32) -> (i32, i32) {
    %c0_i32 = arith.constant 0 : i32
    %c0_i32_0 = arith.constant 0 : i32
    return %arg0, %c0_i32 : i32, i32
  }
}

</mosaic_0001>

<llo_original>
// kernel: tpu_custom_call.1
$region0: #{tpu_custom_call.1}
  #allocation0 [shape = 'u32[]', space=smem, size = 0x4, offset = 0x4, fixed_abs, tag = 'smem constant byte address 0x4 - core index']
  #allocation1 [shape = 'u32[144,128]{1,0:T(1,128)}', space=vmem, size = 0x12000, scoped, tag = 'internal scratch']
  %s0 = inlined_call_operand.hbm [shape: bf16[128,896], index: 0, kind: input, shape index: {}]
  %s1 = inlined_call_operand.hbm [shape: bf16[896,256], index: 1, kind: input, shape index: {}]
  %s2 = inlined_call_operand.vmem [shape: f32[1,256], index: 2, kind: input, shape index: {}]
  %s3 = inlined_call_operand.hbm [shape: bf16[256,256], index: 3, kind: input, shape index: {}]
  %s4 = inlined_call_operand.vmem [shape: f32[1,256], index: 4, kind: input, shape index: {}]
  %s5 = inlined_call_operand.hbm [shape: bf16[256,256], index: 5, kind: input, shape index: {}]
  %s6 = inlined_call_operand.vmem [shape: f32[1,256], index: 6, kind: input, shape index: {}]
  %s7 = inlined_call_operand.hbm [shape: bf16[256,128], index: 7, kind: input, shape index: {}]
  %s8 = inlined_call_operand.vmem [shape: f32[1,128], index: 8, kind: input, shape index: {}]
  %s9 = inlined_call_operand.hbm [shape: f32[128,128], index: 9, kind: output, shape index: {}]
  %s10 = sld [smem:[#allocation0]]
  $region66: #{tpu_custom_call.1} parent=0
    _
  %s12 = ssub.s32 1, %s10
  %s13 = scalar_select 0, %s12, %s10
  $region1: #{tpu_custom_call.1} parent=0
    #allocation2 [shape = 'u8[229376]{0}', space=vmem, size = 0x38000, scoped, tag = 'input window, operand 0, single buffered']
    #allocation3 [shape = 's32[1]{0}', space=sflag, size = 0x4, scoped, tag = 'scoped memory for tpu_custom_call.1']
    #allocation4 [shape = 's32[1]{0}', space=sflag, size = 0x4, scoped, tag = 'scoped memory for tpu_custom_call.1']
    #allocation5 [shape = 'u8[458752]{0}', space=vmem, size = 0x70000, scoped, tag = 'input window, operand 1, single buffered']
    #allocation6 [shape = 's32[1]{0}', space=sflag, size = 0x4, scoped, tag = 'scoped memory for tpu_custom_call.1']
    #allocation7 [shape = 'u8[131072]{0}', space=vmem, size = 0x20000, scoped, tag = 'input window, operand 3, single buffered']
    #allocation8 [shape = 'u8[131072]{0}', space=vmem, size = 0x20000, scoped, tag = 'input window, operand 5, single buffered']
    #allocation9 [shape = 's32[1]{0}', space=sflag, size = 0x4, scoped, tag = 'scoped memory for tpu_custom_call.1']
    #allocation10 [shape = 'u8[65536]{0}', space=vmem, size = 0x10000, scoped, tag = 'input window, operand 7, single buffered']
    #allocation11 [shape = 'u8[65536]{0}', space=vmem, size = 0x10000, scoped, tag = 'output window, operand 0, single buffered']
    %14 = vsyncpa [#allocation3], 0
    %15 = vsyncpa [#allocation6], 0
    %16 = vsyncpa [#allocation9], 0
    %17 = vsyncpa [#allocation4], 0
    // Predicated region
    $region2: #{tpu_custom_call.1} parent=1 // pred_check
      _
    $region3: #{tpu_custom_call.1} parent=1 // pred_check_branch
      %19 = sbr.rel (0) target = $region5
    $region4: #{tpu_custom_call.1} parent=1 // pred_region
      %s21 = ssub.s32 7168, 7168
      %22 = vsyncadd [#allocation3], %s21
      %s23 = sshll.u32 [#allocation2], 4
      %s24 = int_to_ptr.vmem [resolvable:$true] %s23
      %29 = dma.hbm_to_vmem [thread:$0]  %s0, 7168, %s24, [#allocation3], 448, 448, 28
    $region5: #{tpu_custom_call.1} parent=1 // pred_fallthru
      _
    // Predicated region
    $region6: #{tpu_custom_call.1} parent=1 // pred_check
      _
    $region7: #{tpu_custom_call.1} parent=1 // pred_check_branch
      %31 = sbr.rel (0) target = $region9
    $region8: #{tpu_custom_call.1} parent=1 // pred_region
      %s33 = ssub.s32 14336, 14336
      %34 = vsyncadd [#allocation6], %s33
      %s35 = sshll.u32 [#allocation5], 4
      %s36 = int_to_ptr.vmem [resolvable:$true] %s35
      %41 = dma.hbm_to_vmem [thread:$0]  %s1, 14336, %s36, [#allocation6], 128, 128, 8
    $region9: #{tpu_custom_call.1} parent=1 // pred_fallthru
      _
    // Predicated region
    $region10: #{tpu_custom_call.1} parent=1 // pred_check
      _
    $region11: #{tpu_custom_call.1} parent=1 // pred_check_branch
      %43 = sbr.rel (0) target = $region13
    $region12: #{tpu_custom_call.1} parent=1 // pred_region
      _
    $region13: #{tpu_custom_call.1} parent=1 // pred_fallthru
      _
    // Predicated region
    $region14: #{tpu_custom_call.1} parent=1 // pred_check
      _
    $region15: #{tpu_custom_call.1} parent=1 // pred_check_branch
      %45 = sbr.rel (0) target = $region17
    $region16: #{tpu_custom_call.1} parent=1 // pred_region
      %s47 = ssub.s32 4096, 4096
      %48 = vsyncadd [#allocation6], %s47
      %s49 = sshll.u32 [#allocation7], 4
      %s50 = int_to_ptr.vmem [resolvable:$true] %s49
      %55 = dma.hbm_to_vmem [thread:$0]  %s3, 4096, %s50, [#allocation6], 128, 128, 8
    $region17: #{tpu_custom_call.1} parent=1 // pred_fallthru
      _
    // Predicated region
    $region18: #{tpu_custom_call.1} parent=1 // pred_check
      _
    $region19: #{tpu_custom_call.1} parent=1 // pred_check_branch
      %57 = sbr.rel (0) target = $region21
    $region20: #{tpu_custom_call.1} parent=1 // pred_region
      _
    $region21: #{tpu_custom_call.1} parent=1 // pred_fallthru
      _
    // Predicated region
    $region22: #{tpu_custom_call.1} parent=1 // pred_check
      _
    $region23: #{tpu_custom_call.1} parent=1 // pred_check_branch
      %59 = sbr.rel (0) target = $region25
    $region24: #{tpu_custom_call.1} parent=1 // pred_region
      %s61 = ssub.s32 4096, 4096
      %62 = vsyncadd [#allocation9], %s61
      %s63 = sshll.u32 [#allocation8], 4
      %s64 = int_to_ptr.vmem [resolvable:$true] %s63
      %69 = dma.hbm_to_vmem [thread:$0]  %s5, 4096, %s64, [#allocation9], 128, 128, 8
    $region25: #{tpu_custom_call.1} parent=1 // pred_fallthru
      _
    // Predicated region
    $region26: #{tpu_custom_call.1} parent=1 // pred_check
      _
    $region27: #{tpu_custom_call.1} parent=1 // pred_check_branch
      %71 = sbr.rel (0) target = $region29
    $region28: #{tpu_custom_call.1} parent=1 // pred_region
      _
    $region29: #{tpu_custom_call.1} parent=1 // pred_fallthru
      _
    // Predicated region
    $region30: #{tpu_custom_call.1} parent=1 // pred_check
      _
    $region31: #{tpu_custom_call.1} parent=1 // pred_check_branch
      %73 = sbr.rel (0) target = $region33
    $region32: #{tpu_custom_call.1} parent=1 // pred_region
      %s75 = ssub.s32 2048, 2048
      %76 = vsyncadd [#allocation9], %s75
      %s77 = sshll.u32 [#allocation10], 4
      %s78 = int_to_ptr.vmem [resolvable:$true] %s77
      %83 = dma.hbm_to_vmem [thread:$0]  %s7, 2048, %s78, [#allocation9], 64, 64, 4
    $region33: #{tpu_custom_call.1} parent=1 // pred_fallthru
      _
    // Predicated region
    $region34: #{tpu_custom_call.1} parent=1 // pred_check
      _
    $region35: #{tpu_custom_call.1} parent=1 // pred_check_branch
      %85 = sbr.rel (0) target = $region37
    $region36: #{tpu_custom_call.1} parent=1 // pred_region
      _
    $region37: #{tpu_custom_call.1} parent=1 // pred_fallthru
      _
    // Predicated region
    $region38: #{tpu_custom_call.1} parent=1 // pred_check
      _
    $region39: #{tpu_custom_call.1} parent=1 // pred_check_branch
      %87 = sbr.rel (0) target = $region41
    $region40: #{tpu_custom_call.1} parent=1 // pred_region
      %88 = dma.done [#allocation3], 7168
    $region41: #{tpu_custom_call.1} parent=1 // pred_fallthru
      _
    // Predicated region
    $region42: #{tpu_custom_call.1} parent=1 // pred_check
      _
    $region43: #{tpu_custom_call.1} parent=1 // pred_check_branch
      %90 = sbr.rel (0) target = $region45
    $region44: #{tpu_custom_call.1} parent=1 // pred_region
      %91 = dma.done [#allocation6], 14336
    $region45: #{tpu_custom_call.1} parent=1 // pred_fallthru
      _
    // Predicated region
    $region46: #{tpu_custom_call.1} parent=1 // pred_check
      _
    $region47: #{tpu_custom_call.1} parent=1 // pred_check_branch
      %93 = sbr.rel (0) target = $region49
    $region48: #{tpu_custom_call.1} parent=1 // pred_region
      %94 = dma.done [#allocation6], 4096
    $region49: #{tpu_custom_call.1} parent=1 // pred_fallthru
      _
    // Predicated region
    $region50: #{tpu_custom_call.1} parent=1 // pred_check
      _
    $region51: #{tpu_custom_call.1} parent=1 // pred_check_branch
      %96 = sbr.rel (0) target = $region53
    $region52: #{tpu_custom_call.1} parent=1 // pred_region
      %97 = dma.done [#allocation9], 4096
    $region53: #{tpu_custom_call.1} parent=1 // pred_fallthru
      _
    // Predicated region
    $region54: #{tpu_custom_call.1} parent=1 // pred_check
      _
    $region55: #{tpu_custom_call.1} parent=1 // pred_check_branch
      %99 = sbr.rel (0) target = $region57
    $region56: #{tpu_custom_call.1} parent=1 // pred_region
      %100 = dma.done [#allocation9], 2048
    $region57: #{tpu_custom_call.1} parent=1 // pred_fallthru
      _
    %v102 = vld [vmem:[#allocation2] sm:$0xff]
    %v103 = vld [vmem:[#allocation2 + $0x8] sm:$0xff]
    %v104 = vld [vmem:[#allocation2 + $0x10] sm:$0xff]
    %v105 = vld [vmem:[#allocation2 + $0x18] sm:$0xf]
    %v106 = vld [vmem:[#allocation2 + $0x1c] sm:$0xff]
    %v107 = vld [vmem:[#allocation2 + $0x24] sm:$0xff]
    %v108 = vld [vmem:[#allocation2 + $0x2c] sm:$0xff]
    %v109 = vld [vmem:[#allocation2 + $0x34] sm:$0xf]
    %v110 = vld [vmem:[#allocation2 + $0x38] sm:$0xff]
    %v111 = vld [vmem:[#allocation2 + $0x40] sm:$0xff]
    %v112 = vld [vmem:[#allocation2 + $0x48] sm:$0xff]
    %v113 = vld [vmem:[#allocation2 + $0x50] sm:$0xf]
    %v114 = vld [vmem:[#allocation2 + $0x54] sm:$0xff]
    %v115 = vld [vmem:[#allocation2 + $0x5c] sm:$0xff]
    %v116 = vld [vmem:[#allocation2 + $0x64] sm:$0xff]
    %v117 = vld [vmem:[#allocation2 + $0x6c] sm:$0xf]
    %v118 = vld [vmem:[#allocation2 + $0x70] sm:$0xff]
    %v119 = vld [vmem:[#allocation2 + $0x78] sm:$0xff]
    %v120 = vld [vmem:[#allocation2 + $0x80] sm:$0xff]
    %v121 = vld [vmem:[#allocation2 + $0x88] sm:$0xf]
    %v122 = vld [vmem:[#allocation2 + $0x8c] sm:$0xff]
    %v123 = vld [vmem:[#allocation2 + $0x94] sm:$0xff]
    %v124 = vld [vmem:[#allocation2 + $0x9c] sm:$0xff]
    %v125 = vld [vmem:[#allocation2 + $0xa4] sm:$0xf]
    %v126 = vld [vmem:[#allocation2 + $0xa8] sm:$0xff]
    %v127 = vld [vmem:[#allocation2 + $0xb0] sm:$0xff]
    %v128 = vld [vmem:[#allocation2 + $0xb8] sm:$0xff]
    %v129 = vld [vmem:[#allocation2 + $0xc0] sm:$0xf]
    %v130 = vld [vmem:[#allocation2 + $0xc4] sm:$0xff]
    %v131 = vld [vmem:[#allocation2 + $0xcc] sm:$0xff]
    %v132 = vld [vmem:[#allocation2 + $0xd4] sm:$0xff]
    %v133 = vld [vmem:[#allocation2 + $0xdc] sm:$0xf]
    %v134 = vld [vmem:[#allocation2 + $0xe0] sm:$0xff]
    %v135 = vld [vmem:[#allocation2 + $0xe8] sm:$0xff]
    %v136 = vld [vmem:[#allocation2 + $0xf0] sm:$0xff]
    %v137 = vld [vmem:[#allocation2 + $0xf8] sm:$0xf]
    %v138 = vld [vmem:[#allocation2 + $0xfc] sm:$0xff]
    %v139 = vld [vmem:[#allocation2 + $0x104] sm:$0xff]
    %v140 = vld [vmem:[#allocation2 + $0x10c] sm:$0xff]
    %v141 = vld [vmem:[#allocation2 + $0x114] sm:$0xf]
    %v142 = vld [vmem:[#allocation2 + $0x118] sm:$0xff]
    %v143 = vld [vmem:[#allocation2 + $0x120] sm:$0xff]
    %v144 = vld [vmem:[#allocation2 + $0x128] sm:$0xff]
    %v145 = vld [vmem:[#allocation2 + $0x130] sm:$0xf]
    %v146 = vld [vmem:[#allocation2 + $0x134] sm:$0xff]
    %v147 = vld [vmem:[#allocation2 + $0x13c] sm:$0xff]
    %v148 = vld [vmem:[#allocation2 + $0x144] sm:$0xff]
    %v149 = vld [vmem:[#allocation2 + $0x14c] sm:$0xf]
    %v150 = vld [vmem:[#allocation2 + $0x150] sm:$0xff]
    %v151 = vld [vmem:[#allocation2 + $0x158] sm:$0xff]
    %v152 = vld [vmem:[#allocation2 + $0x160] sm:$0xff]
    %v153 = vld [vmem:[#allocation2 + $0x168] sm:$0xf]
    %v154 = vld [vmem:[#allocation2 + $0x16c] sm:$0xff]
    %v155 = vld [vmem:[#allocation2 + $0x174] sm:$0xff]
    %v156 = vld [vmem:[#allocation2 + $0x17c] sm:$0xff]
    %v157 = vld [vmem:[#allocation2 + $0x184] sm:$0xf]
    %v158 = vld [vmem:[#allocation2 + $0x188] sm:$0xff]
    %v159 = vld [vmem:[#allocation2 + $0x190] sm:$0xff]
    %v160 = vld [vmem:[#allocation2 + $0x198] sm:$0xff]
    %v161 = vld [vmem:[#allocation2 + $0x1a0] sm:$0xf]
    %v162 = vld [vmem:[#allocation2 + $0x1a4] sm:$0xff]
    %v163 = vld [vmem:[#allocation2 + $0x1ac] sm:$0xff]
    %v164 = vld [vmem:[#allocation2 + $0x1b4] sm:$0xff]
    %v165 = vld [vmem:[#allocation2 + $0x1bc] sm:$0xf]
    %v166 = vld [vmem:[#allocation5] sm:$0xff]
    %v167 = vld [vmem:[#allocation5 + $0x8] sm:$0xff]
    %v168 = vld [vmem:[#allocation5 + $0x10] sm:$0xff]
    %v169 = vld [vmem:[#allocation5 + $0x18] sm:$0xff]
    %v170 = vld [vmem:[#allocation5 + $0x20] sm:$0xff]
    %v171 = vld [vmem:[#allocation5 + $0x28] sm:$0xff]
    %v172 = vld [vmem:[#allocation5 + $0x30] sm:$0xff]
    %v173 = vld [vmem:[#allocation5 + $0x38] sm:$0xff]
    %v174 = vld [vmem:[#allocation5 + $0x40] sm:$0xff]
    %v175 = vld [vmem:[#allocation5 + $0x48] sm:$0xff]
    %v176 = vld [vmem:[#allocation5 + $0x50] sm:$0xff]
    %v177 = vld [vmem:[#allocation5 + $0x58] sm:$0xff]
    %v178 = vld [vmem:[#allocation5 + $0x60] sm:$0xff]
    %v179 = vld [vmem:[#allocation5 + $0x68] sm:$0xff]
    %v180 = vld [vmem:[#allocation5 + $0x70] sm:$0xff]
    %v181 = vld [vmem:[#allocation5 + $0x78] sm:$0xff]
    %v182 = vld [vmem:[#allocation5 + $0x80] sm:$0xff]
    %v183 = vld [vmem:[#allocation5 + $0x88] sm:$0xff]
    %v184 = vld [vmem:[#allocation5 + $0x90] sm:$0xff]
    %v185 = vld [vmem:[#allocation5 + $0x98] sm:$0xff]
    %v186 = vld [vmem:[#allocation5 + $0xa0] sm:$0xff]
    %v187 = vld [vmem:[#allocation5 + $0xa8] sm:$0xff]
    %v188 = vld [vmem:[#allocation5 + $0xb0] sm:$0xff]
    %v189 = vld [vmem:[#allocation5 + $0xb8] sm:$0xff]
    %v190 = vld [vmem:[#allocation5 + $0xc0] sm:$0xff]
    %v191 = vld [vmem:[#allocation5 + $0xc8] sm:$0xff]
    %v192 = vld [vmem:[#allocation5 + $0xd0] sm:$0xff]
    %v193 = vld [vmem:[#allocation5 + $0xd8] sm:$0xff]
    %v194 = vld [vmem:[#allocation5 + $0xe0] sm:$0xff]
    %v195 = vld [vmem:[#allocation5 + $0xe8] sm:$0xff]
    %v196 = vld [vmem:[#allocation5 + $0xf0] sm:$0xff]
    %v197 = vld [vmem:[#allocation5 + $0xf8] sm:$0xff]
    %v198 = vld [vmem:[#allocation5 + $0x100] sm:$0xff]
    %v199 = vld [vmem:[#allocation5 + $0x108] sm:$0xff]
    %v200 = vld [vmem:[#allocation5 + $0x110] sm:$0xff]
    %v201 = vld [vmem:[#allocation5 + $0x118] sm:$0xff]
    %v202 = vld [vmem:[#allocation5 + $0x120] sm:$0xff]
    %v203 = vld [vmem:[#allocation5 + $0x128] sm:$0xff]
    %v204 = vld [vmem:[#allocation5 + $0x130] sm:$0xff]
    %v205 = vld [vmem:[#allocation5 + $0x138] sm:$0xff]
    %v206 = vld [vmem:[#allocation5 + $0x140] sm:$0xff]
    %v207 = vld [vmem:[#allocation5 + $0x148] sm:$0xff]
    %v208 = vld [vmem:[#allocation5 + $0x150] sm:$0xff]
    %v209 = vld [vmem:[#allocation5 + $0x158] sm:$0xff]
    %v210 = vld [vmem:[#allocation5 + $0x160] sm:$0xff]
    %v211 = vld [vmem:[#allocation5 + $0x168] sm:$0xff]
    %v212 = vld [vmem:[#allocation5 + $0x170] sm:$0xff]
    %v213 = vld [vmem:[#allocation5 + $0x178] sm:$0xff]
    %v214 = vld [vmem:[#allocation5 + $0x180] sm:$0xff]
    %v215 = vld [vmem:[#allocation5 + $0x188] sm:$0xff]
    %v216 = vld [vmem:[#allocation5 + $0x190] sm:$0xff]
    %v217 = vld [vmem:[#allocation5 + $0x198] sm:$0xff]
    %v218 = vld [vmem:[#allocation5 + $0x1a0] sm:$0xff]
    %v219 = vld [vmem:[#allocation5 + $0x1a8] sm:$0xff]
    %v220 = vld [vmem:[#allocation5 + $0x1b0] sm:$0xff]
    %v221 = vld [vmem:[#allocation5 + $0x1b8] sm:$0xff]
    %v222 = vld [vmem:[#allocation5 + $0x1c0] sm:$0xff]
    %v223 = vld [vmem:[#allocation5 + $0x1c8] sm:$0xff]
    %v224 = vld [vmem:[#allocation5 + $0x1d0] sm:$0xff]
    %v225 = vld [vmem:[#allocation5 + $0x1d8] sm:$0xff]
    %v226 = vld [vmem:[#allocation5 + $0x1e0] sm:$0xff]
    %v227 = vld [vmem:[#allocation5 + $0x1e8] sm:$0xff]
    %v228 = vld [vmem:[#allocation5 + $0x1f0] sm:$0xff]
    %v229 = vld [vmem:[#allocation5 + $0x1f8] sm:$0xff]
    %v230 = vld [vmem:[#allocation5 + $0x200] sm:$0xff]
    %v231 = vld [vmem:[#allocation5 + $0x208] sm:$0xff]
    %v232 = vld [vmem:[#allocation5 + $0x210] sm:$0xff]
    %v233 = vld [vmem:[#allocation5 + $0x218] sm:$0xff]
    %v234 = vld [vmem:[#allocation5 + $0x220] sm:$0xff]
    %v235 = vld [vmem:[#allocation5 + $0x228] sm:$0xff]
    %v236 = vld [vmem:[#allocation5 + $0x230] sm:$0xff]
    %v237 = vld [vmem:[#allocation5 + $0x238] sm:$0xff]
    %v238 = vld [vmem:[#allocation5 + $0x240] sm:$0xff]
    %v239 = vld [vmem:[#allocation5 + $0x248] sm:$0xff]
    %v240 = vld [vmem:[#allocation5 + $0x250] sm:$0xff]
    %v241 = vld [vmem:[#allocation5 + $0x258] sm:$0xff]
    %v242 = vld [vmem:[#allocation5 + $0x260] sm:$0xff]
    %v243 = vld [vmem:[#allocation5 + $0x268] sm:$0xff]
    %v244 = vld [vmem:[#allocation5 + $0x270] sm:$0xff]
    %v245 = vld [vmem:[#allocation5 + $0x278] sm:$0xff]
    %v246 = vld [vmem:[#allocation5 + $0x280] sm:$0xff]
    %v247 = vld [vmem:[#allocation5 + $0x288] sm:$0xff]
    %v248 = vld [vmem:[#allocation5 + $0x290] sm:$0xff]
    %v249 = vld [vmem:[#allocation5 + $0x298] sm:$0xff]
    %v250 = vld [vmem:[#allocation5 + $0x2a0] sm:$0xff]
    %v251 = vld [vmem:[#allocation5 + $0x2a8] sm:$0xff]
    %v252 = vld [vmem:[#allocation5 + $0x2b0] sm:$0xff]
    %v253 = vld [vmem:[#allocation5 + $0x2b8] sm:$0xff]
    %v254 = vld [vmem:[#allocation5 + $0x2c0] sm:$0xff]
    %v255 = vld [vmem:[#allocation5 + $0x2c8] sm:$0xff]
    %v256 = vld [vmem:[#allocation5 + $0x2d0] sm:$0xff]
    %v257 = vld [vmem:[#allocation5 + $0x2d8] sm:$0xff]
    %v258 = vld [vmem:[#allocation5 + $0x2e0] sm:$0xff]
    %v259 = vld [vmem:[#allocation5 + $0x2e8] sm:$0xff]
    %v260 = vld [vmem:[#allocation5 + $0x2f0] sm:$0xff]
    %v261 = vld [vmem:[#allocation5 + $0x2f8] sm:$0xff]
    %v262 = vld [vmem:[#allocation5 + $0x300] sm:$0xff]
    %v263 = vld [vmem:[#allocation5 + $0x308] sm:$0xff]
    %v264 = vld [vmem:[#allocation5 + $0x310] sm:$0xff]
    %v265 = vld [vmem:[#allocation5 + $0x318] sm:$0xff]
    %v266 = vld [vmem:[#allocation5 + $0x320] sm:$0xff]
    %v267 = vld [vmem:[#allocation5 + $0x328] sm:$0xff]
    %v268 = vld [vmem:[#allocation5 + $0x330] sm:$0xff]
    %v269 = vld [vmem:[#allocation5 + $0x338] sm:$0xff]
    %v270 = vld [vmem:[#allocation5 + $0x340] sm:$0xff]
    %v271 = vld [vmem:[#allocation5 + $0x348] sm:$0xff]
    %v272 = vld [vmem:[#allocation5 + $0x350] sm:$0xff]
    %v273 = vld [vmem:[#allocation5 + $0x358] sm:$0xff]
    %v274 = vld [vmem:[#allocation5 + $0x360] sm:$0xff]
    %v275 = vld [vmem:[#allocation5 + $0x368] sm:$0xff]
    %v276 = vld [vmem:[#allocation5 + $0x370] sm:$0xff]
    %v277 = vld [vmem:[#allocation5 + $0x378] sm:$0xff]
    %v278 = vld [vmem:[%s2] sm:$0x3]
    %v280 = vlaneseq
    %v281 = vshrl.u32 %v280, 7
    %v282 = vsub.s32 0, %v281
    %v283 = vrot.slane %v278, %v282
    %v284 = vlaneseq
    %v285 = vshrl.u32 %v284, 7
    %v286 = vsub.s32 1, %v285
    %v287 = vrot.slane %v278, %v286
    %v354 = vunpack.c.l.b16 %v102
    %v355 = vunpack.c.h.b16 %v102
    %v356 = vunpack.c.l.b16 %v103
    %v357 = vunpack.c.h.b16 %v103
    %v358 = vunpack.c.l.b16 %v104
    %v359 = vunpack.c.h.b16 %v104
    %v360 = vunpack.c.l.b16 %v105
    %v361 = vunpack.c.l.b16 %v106
    %v362 = vunpack.c.h.b16 %v106
    %v363 = vunpack.c.l.b16 %v107
    %v364 = vunpack.c.h.b16 %v107
    %v365 = vunpack.c.l.b16 %v108
    %v366 = vunpack.c.h.b16 %v108
    %v367 = vunpack.c.l.b16 %v109
    %v368 = vunpack.c.l.b16 %v110
    %v369 = vunpack.c.h.b16 %v110
    %v370 = vunpack.c.l.b16 %v111
    %v371 = vunpack.c.h.b16 %v111
    %v372 = vunpack.c.l.b16 %v112
    %v373 = vunpack.c.h.b16 %v112
    %v374 = vunpack.c.l.b16 %v113
    %v375 = vunpack.c.l.b16 %v114
    %v376 = vunpack.c.h.b16 %v114
    %v377 = vunpack.c.l.b16 %v115
    %v378 = vunpack.c.h.b16 %v115
    %v379 = vunpack.c.l.b16 %v116
    %v380 = vunpack.c.h.b16 %v116
    %v381 = vunpack.c.l.b16 %v117
    %v382 = vunpack.c.l.b16 %v118
    %v383 = vunpack.c.h.b16 %v118
    %v384 = vunpack.c.l.b16 %v119
    %v385 = vunpack.c.h.b16 %v119
    %v386 = vunpack.c.l.b16 %v120
    %v387 = vunpack.c.h.b16 %v120
    %v388 = vunpack.c.l.b16 %v121
    %v389 = vunpack.c.l.b16 %v122
    %v390 = vunpack.c.h.b16 %v122
    %v391 = vunpack.c.l.b16 %v123
    %v392 = vunpack.c.h.b16 %v123
    %v393 = vunpack.c.l.b16 %v124
    %v394 = vunpack.c.h.b16 %v124
    %v395 = vunpack.c.l.b16 %v125
    %v396 = vunpack.c.l.b16 %v126
    %v397 = vunpack.c.h.b16 %v126
    %v398 = vunpack.c.l.b16 %v127
    %v399 = vunpack.c.h.b16 %v127
    %v400 = vunpack.c.l.b16 %v128
    %v401 = vunpack.c.h.b16 %v128
    %v402 = vunpack.c.l.b16 %v129
    %v403 = vunpack.c.l.b16 %v130
    %v404 = vunpack.c.h.b16 %v130
    %v405 = vunpack.c.l.b16 %v131
    %v406 = vunpack.c.h.b16 %v131
    %v407 = vunpack.c.l.b16 %v132
    %v408 = vunpack.c.h.b16 %v132
    %v409 = vunpack.c.l.b16 %v133
    %v410 = vunpack.c.l.b16 %v134
    %v411 = vunpack.c.h.b16 %v134
    %v412 = vunpack.c.l.b16 %v135
    %v413 = vunpack.c.h.b16 %v135
    %v414 = vunpack.c.l.b16 %v136
    %v415 = vunpack.c.h.b16 %v136
    %v416 = vunpack.c.l.b16 %v137
    %v417 = vunpack.c.l.b16 %v138
    %v418 = vunpack.c.h.b16 %v138
    %v419 = vunpack.c.l.b16 %v139
    %v420 = vunpack.c.h.b16 %v139
    %v421 = vunpack.c.l.b16 %v140
    %v422 = vunpack.c.h.b16 %v140
    %v423 = vunpack.c.l.b16 %v141
    %v424 = vunpack.c.l.b16 %v142
    %v425 = vunpack.c.h.b16 %v142
    %v426 = vunpack.c.l.b16 %v143
    %v427 = vunpack.c.h.b16 %v143
    %v428 = vunpack.c.l.b16 %v144
    %v429 = vunpack.c.h.b16 %v144
    %v430 = vunpack.c.l.b16 %v145
    %v431 = vunpack.c.l.b16 %v146
    %v432 = vunpack.c.h.b16 %v146
    %v433 = vunpack.c.l.b16 %v147
    %v434 = vunpack.c.h.b16 %v147
    %v435 = vunpack.c.l.b16 %v148
    %v436 = vunpack.c.h.b16 %v148
    %v437 = vunpack.c.l.b16 %v149
    %v438 = vunpack.c.l.b16 %v150
    %v439 = vunpack.c.h.b16 %v150
    %v440 = vunpack.c.l.b16 %v151
    %v441 = vunpack.c.h.b16 %v151
    %v442 = vunpack.c.l.b16 %v152
    %v443 = vunpack.c.h.b16 %v152
    %v444 = vunpack.c.l.b16 %v153
    %v445 = vunpack.c.l.b16 %v154
    %v446 = vunpack.c.h.b16 %v154
    %v447 = vunpack.c.l.b16 %v155
    %v448 = vunpack.c.h.b16 %v155
    %v449 = vunpack.c.l.b16 %v156
    %v450 = vunpack.c.h.b16 %v156
    %v451 = vunpack.c.l.b16 %v157
    %v452 = vunpack.c.l.b16 %v158
    %v453 = vunpack.c.h.b16 %v158
    %v454 = vunpack.c.l.b16 %v159
    %v455 = vunpack.c.h.b16 %v159
    %v456 = vunpack.c.l.b16 %v160
    %v457 = vunpack.c.h.b16 %v160
    %v458 = vunpack.c.l.b16 %v161
    %v459 = vunpack.c.l.b16 %v162
    %v460 = vunpack.c.h.b16 %v162
    %v461 = vunpack.c.l.b16 %v163
    %v462 = vunpack.c.h.b16 %v163
    %v463 = vunpack.c.l.b16 %v164
    %v464 = vunpack.c.h.b16 %v164
    %v465 = vunpack.c.l.b16 %v165
    %v466 = vpack.c.b16 %v361, %v354
    %v467 = vpack.c.b16 %v362, %v355
    %v468 = vpack.c.b16 %v363, %v356
    %v469 = vpack.c.b16 %v364, %v357
    %v470 = vpack.c.b16 %v365, %v358
    %v471 = vpack.c.b16 %v366, %v359
    %v472 = vpack.c.b16 %v367, %v360
    %v473 = vpack.c.b16 %v375, %v368
    %v474 = vpack.c.b16 %v376, %v369
    %v475 = vpack.c.b16 %v377, %v370
    %v476 = vpack.c.b16 %v378, %v371
    %v477 = vpack.c.b16 %v379, %v372
    %v478 = vpack.c.b16 %v380, %v373
    %v479 = vpack.c.b16 %v381, %v374
    %v480 = vpack.c.b16 %v389, %v382
    %v481 = vpack.c.b16 %v390, %v383
    %v482 = vpack.c.b16 %v391, %v384
    %v483 = vpack.c.b16 %v392, %v385
    %v484 = vpack.c.b16 %v393, %v386
    %v485 = vpack.c.b16 %v394, %v387
    %v486 = vpack.c.b16 %v395, %v388
    %v487 = vpack.c.b16 %v403, %v396
    %v488 = vpack.c.b16 %v404, %v397
    %v489 = vpack.c.b16 %v405, %v398
    %v490 = vpack.c.b16 %v406, %v399
    %v491 = vpack.c.b16 %v407, %v400
    %v492 = vpack.c.b16 %v408, %v401
    %v493 = vpack.c.b16 %v409, %v402
    %v494 = vpack.c.b16 %v417, %v410
    %v495 = vpack.c.b16 %v418, %v411
    %v496 = vpack.c.b16 %v419, %v412
    %v497 = vpack.c.b16 %v420, %v413
    %v498 = vpack.c.b16 %v421, %v414
    %v499 = vpack.c.b16 %v422, %v415
    %v500 = vpack.c.b16 %v423, %v416
    %v501 = vpack.c.b16 %v431, %v424
    %v502 = vpack.c.b16 %v432, %v425
    %v503 = vpack.c.b16 %v433, %v426
    %v504 = vpack.c.b16 %v434, %v427
    %v505 = vpack.c.b16 %v435, %v428
    %v506 = vpack.c.b16 %v436, %v429
    %v507 = vpack.c.b16 %v437, %v430
    %v508 = vpack.c.b16 %v445, %v438
    %v509 = vpack.c.b16 %v446, %v439
    %v510 = vpack.c.b16 %v447, %v440
    %v511 = vpack.c.b16 %v448, %v441
    %v512 = vpack.c.b16 %v449, %v442
    %v513 = vpack.c.b16 %v450, %v443
    %v514 = vpack.c.b16 %v451, %v444
    %v515 = vpack.c.b16 %v459, %v452
    %v516 = vpack.c.b16 %v460, %v453
    %v517 = vpack.c.b16 %v461, %v454
    %v518 = vpack.c.b16 %v462, %v455
    %v519 = vpack.c.b16 %v463, %v456
    %v520 = vpack.c.b16 %v464, %v457
    %v521 = vpack.c.b16 %v465, %v458
    %v690 = vunpack.c.l.b16 %v166
    %v691 = vunpack.c.h.b16 %v166
    %v692 = vunpack.c.l.b16 %v167
    %v693 = vunpack.c.h.b16 %v167
    %v694 = vunpack.c.l.b16 %v168
    %v695 = vunpack.c.h.b16 %v168
    %v696 = vunpack.c.l.b16 %v169
    %v697 = vunpack.c.h.b16 %v169
    %v698 = vunpack.c.l.b16 %v170
    %v699 = vunpack.c.h.b16 %v170
    %v700 = vunpack.c.l.b16 %v171
    %v701 = vunpack.c.h.b16 %v171
    %v702 = vunpack.c.l.b16 %v172
    %v703 = vunpack.c.h.b16 %v172
    %v704 = vunpack.c.l.b16 %v173
    %v705 = vunpack.c.h.b16 %v173
    %v706 = vunpack.c.l.b16 %v174
    %v707 = vunpack.c.h.b16 %v174
    %v708 = vunpack.c.l.b16 %v175
    %v709 = vunpack.c.h.b16 %v175
    %v710 = vunpack.c.l.b16 %v176
    %v711 = vunpack.c.h.b16 %v176
    %v712 = vunpack.c.l.b16 %v177
    %v713 = vunpack.c.h.b16 %v177
    %v714 = vunpack.c.l.b16 %v178
    %v715 = vunpack.c.h.b16 %v178
    %v716 = vunpack.c.l.b16 %v179
    %v717 = vunpack.c.h.b16 %v179
    %v718 = vunpack.c.l.b16 %v180
    %v719 = vunpack.c.h.b16 %v180
    %v720 = vunpack.c.l.b16 %v181
    %v721 = vunpack.c.h.b16 %v181
    %v722 = vunpack.c.l.b16 %v182
    %v723 = vunpack.c.h.b16 %v182
    %v724 = vunpack.c.l.b16 %v183
    %v725 = vunpack.c.h.b16 %v183
    %v726 = vunpack.c.l.b16 %v184
    %v727 = vunpack.c.h.b16 %v184
    %v728 = vunpack.c.l.b16 %v185
    %v729 = vunpack.c.h.b16 %v185
    %v730 = vunpack.c.l.b16 %v186
    %v731 = vunpack.c.h.b16 %v186
    %v732 = vunpack.c.l.b16 %v187
    %v733 = vunpack.c.h.b16 %v187
    %v734 = vunpack.c.l.b16 %v188
    %v735 = vunpack.c.h.b16 %v188
    %v736 = vunpack.c.l.b16 %v189
    %v737 = vunpack.c.h.b16 %v189
    %v738 = vunpack.c.l.b16 %v190
    %v739 = vunpack.c.h.b16 %v190
    %v740 = vunpack.c.l.b16 %v191
    %v741 = vunpack.c.h.b16 %v191
    %v742 = vunpack.c.l.b16 %v192
    %v743 = vunpack.c.h.b16 %v192
    %v744 = vunpack.c.l.b16 %v193
    %v745 = vunpack.c.h.b16 %v193
    %v746 = vunpack.c.l.b16 %v194
    %v747 = vunpack.c.h.b16 %v194
    %v748 = vunpack.c.l.b16 %v195
    %v749 = vunpack.c.h.b16 %v195
    %v750 = vunpack.c.l.b16 %v196
    %v751 = vunpack.c.h.b16 %v196
    %v752 = vunpack.c.l.b16 %v197
    %v753 = vunpack.c.h.b16 %v197
    %v754 = vunpack.c.l.b16 %v198
    %v755 = vunpack.c.h.b16 %v198
    %v756 = vunpack.c.l.b16 %v199
    %v757 = vunpack.c.h.b16 %v199
    %v758 = vunpack.c.l.b16 %v200
    %v759 = vunpack.c.h.b16 %v200
    %v760 = vunpack.c.l.b16 %v201
    %v761 = vunpack.c.h.b16 %v201
    %v762 = vunpack.c.l.b16 %v202
    %v763 = vunpack.c.h.b16 %v202
    %v764 = vunpack.c.l.b16 %v203
    %v765 = vunpack.c.h.b16 %v203
    %v766 = vunpack.c.l.b16 %v204
    %v767 = vunpack.c.h.b16 %v204
    %v768 = vunpack.c.l.b16 %v205
    %v769 = vunpack.c.h.b16 %v205
    %v770 = vunpack.c.l.b16 %v206
    %v771 = vunpack.c.h.b16 %v206
    %v772 = vunpack.c.l.b16 %v207
    %v773 = vunpack.c.h.b16 %v207
    %v774 = vunpack.c.l.b16 %v208
    %v775 = vunpack.c.h.b16 %v208
    %v776 = vunpack.c.l.b16 %v209
    %v777 = vunpack.c.h.b16 %v209
    %v778 = vunpack.c.l.b16 %v210
    %v779 = vunpack.c.h.b16 %v210
    %v780 = vunpack.c.l.b16 %v211
    %v781 = vunpack.c.h.b16 %v211
    %v782 = vunpack.c.l.b16 %v212
    %v783 = vunpack.c.h.b16 %v212
    %v784 = vunpack.c.l.b16 %v213
    %v785 = vunpack.c.h.b16 %v213
    %v786 = vunpack.c.l.b16 %v214
    %v787 = vunpack.c.h.b16 %v214
    %v788 = vunpack.c.l.b16 %v215
    %v789 = vunpack.c.h.b16 %v215
    %v790 = vunpack.c.l.b16 %v216
    %v791 = vunpack.c.h.b16 %v216
    %v792 = vunpack.c.l.b16 %v217
    %v793 = vunpack.c.h.b16 %v217
    %v794 = vunpack.c.l.b16 %v218
    %v795 = vunpack.c.h.b16 %v218
    %v796 = vunpack.c.l.b16 %v219
    %v797 = vunpack.c.h.b16 %v219
    %v798 = vunpack.c.l.b16 %v220
    %v799 = vunpack.c.h.b16 %v220
    %v800 = vunpack.c.l.b16 %v221
    %v801 = vunpack.c.h.b16 %v221
    %v802 = vunpack.c.l.b16 %v222
    %v803 = vunpack.c.h.b16 %v222
    %v804 = vunpack.c.l.b16 %v223
    %v805 = vunpack.c.h.b16 %v223
    %v806 = vunpack.c.l.b16 %v224
    %v807 = vunpack.c.h.b16 %v224
    %v808 = vunpack.c.l.b16 %v225
    %v809 = vunpack.c.h.b16 %v225
    %v810 = vunpack.c.l.b16 %v226
    %v811 = vunpack.c.h.b16 %v226
    %v812 = vunpack.c.l.b16 %v227
    %v813 = vunpack.c.h.b16 %v227
    %v814 = vunpack.c.l.b16 %v228
    %v815 = vunpack.c.h.b16 %v228
    %v816 = vunpack.c.l.b16 %v229
    %v817 = vunpack.c.h.b16 %v229
    %v818 = vunpack.c.l.b16 %v230
    %v819 = vunpack.c.h.b16 %v230
    %v820 = vunpack.c.l.b16 %v231
    %v821 = vunpack.c.h.b16 %v231
    %v822 = vunpack.c.l.b16 %v232
    %v823 = vunpack.c.h.b16 %v232
    %v824 = vunpack.c.l.b16 %v233
    %v825 = vunpack.c.h.b16 %v233
    %v826 = vunpack.c.l.b16 %v234
    %v827 = vunpack.c.h.b16 %v234
    %v828 = vunpack.c.l.b16 %v235
    %v829 = vunpack.c.h.b16 %v235
    %v830 = vunpack.c.l.b16 %v236
    %v831 = vunpack.c.h.b16 %v236
    %v832 = vunpack.c.l.b16 %v237
    %v833 = vunpack.c.h.b16 %v237
    %v834 = vunpack.c.l.b16 %v238
    %v835 = vunpack.c.h.b16 %v238
    %v836 = vunpack.c.l.b16 %v239
    %v837 = vunpack.c.h.b16 %v239
    %v838 = vunpack.c.l.b16 %v240
    %v839 = vunpack.c.h.b16 %v240
    %v840 = vunpack.c.l.b16 %v241
    %v841 = vunpack.c.h.b16 %v241
    %v842 = vunpack.c.l.b16 %v242
    %v843 = vunpack.c.h.b16 %v242
    %v844 = vunpack.c.l.b16 %v243
    %v845 = vunpack.c.h.b16 %v243
    %v846 = vunpack.c.l.b16 %v244
    %v847 = vunpack.c.h.b16 %v244
    %v848 = vunpack.c.l.b16 %v245
    %v849 = vunpack.c.h.b16 %v245
    %v850 = vunpack.c.l.b16 %v246
    %v851 = vunpack.c.h.b16 %v246
    %v852 = vunpack.c.l.b16 %v247
    %v853 = vunpack.c.h.b16 %v247
    %v854 = vunpack.c.l.b16 %v248
    %v855 = vunpack.c.h.b16 %v248
    %v856 = vunpack.c.l.b16 %v249
    %v857 = vunpack.c.h.b16 %v249
    %v858 = vunpack.c.l.b16 %v250
    %v859 = vunpack.c.h.b16 %v250
    %v860 = vunpack.c.l.b16 %v251
    %v861 = vunpack.c.h.b16 %v251
    %v862 = vunpack.c.l.b16 %v252
    %v863 = vunpack.c.h.b16 %v252
    %v864 = vunpack.c.l.b16 %v253
    %v865 = vunpack.c.h.b16 %v253
    %v866 = vunpack.c.l.b16 %v254
    %v867 = vunpack.c.h.b16 %v254
    %v868 = vunpack.c.l.b16 %v255
    %v869 = vunpack.c.h.b16 %v255
    %v870 = vunpack.c.l.b16 %v256
    %v871 = vunpack.c.h.b16 %v256
    %v872 = vunpack.c.l.b16 %v257
    %v873 = vunpack.c.h.b16 %v257
    %v874 = vunpack.c.l.b16 %v258
    %v875 = vunpack.c.h.b16 %v258
    %v876 = vunpack.c.l.b16 %v259
    %v877 = vunpack.c.h.b16 %v259
    %v878 = vunpack.c.l.b16 %v260
    %v879 = vunpack.c.h.b16 %v260
    %v880 = vunpack.c.l.b16 %v261
    %v881 = vunpack.c.h.b16 %v261
    %v882 = vunpack.c.l.b16 %v262
    %v883 = vunpack.c.h.b16 %v262
    %v884 = vunpack.c.l.b16 %v263
    %v885 = vunpack.c.h.b16 %v263
    %v886 = vunpack.c.l.b16 %v264
    %v887 = vunpack.c.h.b16 %v264
    %v888 = vunpack.c.l.b16 %v265
    %v889 = vunpack.c.h.b16 %v265
    %v890 = vunpack.c.l.b16 %v266
    %v891 = vunpack.c.h.b16 %v266
    %v892 = vunpack.c.l.b16 %v267
    %v893 = vunpack.c.h.b16 %v267
    %v894 = vunpack.c.l.b16 %v268
    %v895 = vunpack.c.h.b16 %v268
    %v896 = vunpack.c.l.b16 %v269
    %v897 = vunpack.c.h.b16 %v269
    %v898 = vunpack.c.l.b16 %v270
    %v899 = vunpack.c.h.b16 %v270
    %v900 = vunpack.c.l.b16 %v271
    %v901 = vunpack.c.h.b16 %v271
    %v902 = vunpack.c.l.b16 %v272
    %v903 = vunpack.c.h.b16 %v272
    %v904 = vunpack.c.l.b16 %v273
    %v905 = vunpack.c.h.b16 %v273
    %v906 = vunpack.c.l.b16 %v274
    %v907 = vunpack.c.h.b16 %v274
    %v908 = vunpack.c.l.b16 %v275
    %v909 = vunpack.c.h.b16 %v275
    %v910 = vunpack.c.l.b16 %v276
    %v911 = vunpack.c.h.b16 %v276
    %v912 = vunpack.c.l.b16 %v277
    %v913 = vunpack.c.h.b16 %v277
    %v914 = vpack.c.b16 %v692, %v690
    %v915 = vpack.c.b16 %v693, %v691
    %v916 = vpack.c.b16 %v696, %v694
    %v917 = vpack.c.b16 %v697, %v695
    %v918 = vpack.c.b16 %v700, %v698
    %v919 = vpack.c.b16 %v701, %v699
    %v920 = vpack.c.b16 %v704, %v702
    %v921 = vpack.c.b16 %v705, %v703
    %v922 = vpack.c.b16 %v708, %v706
    %v923 = vpack.c.b16 %v709, %v707
    %v924 = vpack.c.b16 %v712, %v710
    %v925 = vpack.c.b16 %v713, %v711
    %v926 = vpack.c.b16 %v716, %v714
    %v927 = vpack.c.b16 %v717, %v715
    %v928 = vpack.c.b16 %v720, %v718
    %v929 = vpack.c.b16 %v721, %v719
    %v930 = vpack.c.b16 %v724, %v722
    %v931 = vpack.c.b16 %v725, %v723
    %v932 = vpack.c.b16 %v728, %v726
    %v933 = vpack.c.b16 %v729, %v727
    %v934 = vpack.c.b16 %v732, %v730
    %v935 = vpack.c.b16 %v733, %v731
    %v936 = vpack.c.b16 %v736, %v734
    %v937 = vpack.c.b16 %v737, %v735
    %v938 = vpack.c.b16 %v740, %v738
    %v939 = vpack.c.b16 %v741, %v739
    %v940 = vpack.c.b16 %v744, %v742
    %v941 = vpack.c.b16 %v745, %v743
    %v942 = vpack.c.b16 %v748, %v746
    %v943 = vpack.c.b16 %v749, %v747
    %v944 = vpack.c.b16 %v752, %v750
    %v945 = vpack.c.b16 %v753, %v751
    %v946 = vpack.c.b16 %v756, %v754
    %v947 = vpack.c.b16 %v757, %v755
    %v948 = vpack.c.b16 %v760, %v758
    %v949 = vpack.c.b16 %v761, %v759
    %v950 = vpack.c.b16 %v764, %v762
    %v951 = vpack.c.b16 %v765, %v763
    %v952 = vpack.c.b16 %v768, %v766
    %v953 = vpack.c.b16 %v769, %v767
    %v954 = vpack.c.b16 %v772, %v770
    %v955 = vpack.c.b16 %v773, %v771
    %v956 = vpack.c.b16 %v776, %v774
    %v957 = vpack.c.b16 %v777, %v775
    %v958 = vpack.c.b16 %v780, %v778
    %v959 = vpack.c.b16 %v781, %v779
    %v960 = vpack.c.b16 %v784, %v782
    %v961 = vpack.c.b16 %v785, %v783
    %v962 = vpack.c.b16 %v788, %v786
    %v963 = vpack.c.b16 %v789, %v787
    %v964 = vpack.c.b16 %v792, %v790
    %v965 = vpack.c.b16 %v793, %v791
    %v966 = vpack.c.b16 %v796, %v794
    %v967 = vpack.c.b16 %v797, %v795
    %v968 = vpack.c.b16 %v800, %v798
    %v969 = vpack.c.b16 %v801, %v799
    %v970 = vpack.c.b16 %v804, %v802
    %v971 = vpack.c.b16 %v805, %v803
    %v972 = vpack.c.b16 %v808, %v806
    %v973 = vpack.c.b16 %v809, %v807
    %v974 = vpack.c.b16 %v812, %v810
    %v975 = vpack.c.b16 %v813, %v811
    %v976 = vpack.c.b16 %v816, %v814
    %v977 = vpack.c.b16 %v817, %v815
    %v978 = vpack.c.b16 %v820, %v818
    %v979 = vpack.c.b16 %v821, %v819
    %v980 = vpack.c.b16 %v824, %v822
    %v981 = vpack.c.b16 %v825, %v823
    %v982 = vpack.c.b16 %v828, %v826
    %v983 = vpack.c.b16 %v829, %v827
    %v984 = vpack.c.b16 %v832, %v830
    %v985 = vpack.c.b16 %v833, %v831
    %v986 = vpack.c.b16 %v836, %v834
    %v987 = vpack.c.b16 %v837, %v835
    %v988 = vpack.c.b16 %v840, %v838
    %v989 = vpack.c.b16 %v841, %v839
    %v990 = vpack.c.b16 %v844, %v842
    %v991 = vpack.c.b16 %v845, %v843
    %v992 = vpack.c.b16 %v848, %v846
    %v993 = vpack.c.b16 %v849, %v847
    %v994 = vpack.c.b16 %v852, %v850
    %v995 = vpack.c.b16 %v853, %v851
    %v996 = vpack.c.b16 %v856, %v854
    %v997 = vpack.c.b16 %v857, %v855
    %v998 = vpack.c.b16 %v860, %v858
    %v999 = vpack.c.b16 %v861, %v859
    %v1000 = vpack.c.b16 %v864, %v862
    %v1001 = vpack.c.b16 %v865, %v863
    %v1002 = vpack.c.b16 %v868, %v866
    %v1003 = vpack.c.b16 %v869, %v867
    %v1004 = vpack.c.b16 %v872, %v870
    %v1005 = vpack.c.b16 %v873, %v871
    %v1006 = vpack.c.b16 %v876, %v874
    %v1007 = vpack.c.b16 %v877, %v875
    %v1008 = vpack.c.b16 %v880, %v878
    %v1009 = vpack.c.b16 %v881, %v879
    %v1010 = vpack.c.b16 %v884, %v882
    %v1011 = vpack.c.b16 %v885, %v883
    %v1012 = vpack.c.b16 %v888, %v886
    %v1013 = vpack.c.b16 %v889, %v887
    %v1014 = vpack.c.b16 %v892, %v890
    %v1015 = vpack.c.b16 %v893, %v891
    %v1016 = vpack.c.b16 %v896, %v894
    %v1017 = vpack.c.b16 %v897, %v895
    %v1018 = vpack.c.b16 %v900, %v898
    %v1019 = vpack.c.b16 %v901, %v899
    %v1020 = vpack.c.b16 %v904, %v902
    %v1021 = vpack.c.b16 %v905, %v903
    %v1022 = vpack.c.b16 %v908, %v906
    %v1023 = vpack.c.b16 %v909, %v907
    %v1024 = vpack.c.b16 %v912, %v910
    %v1025 = vpack.c.b16 %v913, %v911
    %1138 = vmatprep.subr.bf16.mxu0 %v915
    %1139 = vmatpush1.bf16.msra.mxu0 %v914
    %1140 = vmatprep.subr.bf16.mxu0 %v917
    %1141 = vmatpush1.bf16.msra.mxu0 %v916
    %1142 = vmatprep.subr.bf16.mxu0 %v919
    %1143 = vmatpush1.bf16.msra.mxu0 %v918
    %1144 = vmatprep.subr.bf16.mxu0 %v921
    %1145 = vmatpush1.bf16.msra.mxu0 %v920
    %1146 = vmatprep.subr.bf16.mxu0 %v923
    %1147 = vmatpush1.bf16.msra.mxu0 %v922
    %1148 = vmatprep.subr.bf16.mxu0 %v925
    %1149 = vmatpush1.bf16.msra.mxu0 %v924
    %1150 = vmatprep.subr.bf16.mxu0 %v927
    %1151 = vmatpush1.bf16.msra.mxu0 %v926
    %1152 = vmatprep.subr.bf16.mxu0 %v929
    %1153 = vmatpush1.bf16.msra.mxu0 %v928
    %1154 = vmatprep.subr.bf16.mxu0 %v931
    %1155 = vmatpush1.bf16.msra.mxu0 %v930
    %1156 = vmatprep.subr.bf16.mxu0 %v933
    %1157 = vmatpush1.bf16.msra.mxu0 %v932
    %1158 = vmatprep.subr.bf16.mxu0 %v935
    %1159 = vmatpush1.bf16.msra.mxu0 %v934
    %1160 = vmatprep.subr.bf16.mxu0 %v937
    %1161 = vmatpush1.bf16.msra.mxu0 %v936
    %1162 = vmatprep.subr.bf16.mxu0 %v939
    %1163 = vmatpush1.bf16.msra.mxu0 %v938
    %1164 = vmatprep.subr.bf16.mxu0 %v941
    %1165 = vmatpush1.bf16.msra.mxu0 %v940
    %1166 = vmatprep.subr.bf16.mxu0 %v943
    %1167 = vmatpush1.bf16.msra.mxu0 %v942
    %1168 = vmatprep.subr.bf16.mxu0 %v945
    %1169 = vmatpush1.bf16.msra.mxu0 %v944
    %1170 = vmatprep.mubr.bf16.mxu0 %v467
    %1171 = vmatmul.mubr.bf16.gmra.mrb[0].mxu0 %v466
    %v1172 = vpop.f32.mrb[0].mxu0
    %v1173 = vadd.f32 %v283, %v1172
    %v1174 = vpop.f32.mrb[0].mxu0
    %v1175 = vadd.f32 %v287, %v1174
    %v1176 = vpop.f32.mrb[0].mxu0
    %v1177 = vadd.f32 %v283, %v1176
    %v1178 = vpop.f32.mrb[0].mxu0
    %v1179 = vadd.f32 %v287, %v1178
    %1180 = vmatprep.mubr.bf16.mxu0 %v474
    %1181 = vmatmul.mubr.bf16.gmra.mrb[0].mxu0 %v473
    %v1182 = vpop.f32.mrb[0].mxu0
    %v1183 = vadd.f32 %v283, %v1182
    %v1184 = vpop.f32.mrb[0].mxu0
    %v1185 = vadd.f32 %v287, %v1184
    %v1186 = vpop.f32.mrb[0].mxu0
    %v1187 = vadd.f32 %v283, %v1186
    %v1188 = vpop.f32.mrb[0].mxu0
    %v1189 = vadd.f32 %v287, %v1188
    %1190 = vmatprep.mubr.bf16.mxu0 %v481
    %1191 = vmatmul.mubr.bf16.gmra.mrb[0].mxu0 %v480
    %v1192 = vpop.f32.mrb[0].mxu0
    %v1193 = vadd.f32 %v283, %v1192
    %v1194 = vpop.f32.mrb[0].mxu0
    %v1195 = vadd.f32 %v287, %v1194
    %v1196 = vpop.f32.mrb[0].mxu0
    %v1197 = vadd.f32 %v283, %v1196
    %v1198 = vpop.f32.mrb[0].mxu0
    %v1199 = vadd.f32 %v287, %v1198
    %1200 = vmatprep.mubr.bf16.mxu0 %v488
    %1201 = vmatmul.mubr.bf16.gmra.mrb[0].mxu0 %v487
    %v1202 = vpop.f32.mrb[0].mxu0
    %v1203 = vadd.f32 %v283, %v1202
    %v1204 = vpop.f32.mrb[0].mxu0
    %v1205 = vadd.f32 %v287, %v1204
    %v1206 = vpop.f32.mrb[0].mxu0
    %v1207 = vadd.f32 %v283, %v1206
    %v1208 = vpop.f32.mrb[0].mxu0
    %v1209 = vadd.f32 %v287, %v1208
    %1210 = vmatprep.mubr.bf16.mxu0 %v495
    %1211 = vmatmul.mubr.bf16.gmra.mrb[0].mxu0 %v494
    %v1212 = vpop.f32.mrb[0].mxu0
    %v1213 = vadd.f32 %v283, %v1212
    %v1214 = vpop.f32.mrb[0].mxu0
    %v1215 = vadd.f32 %v287, %v1214
    %v1216 = vpop.f32.mrb[0].mxu0
    %v1217 = vadd.f32 %v283, %v1216
    %v1218 = vpop.f32.mrb[0].mxu0
    %v1219 = vadd.f32 %v287, %v1218
    %1220 = vmatprep.mubr.bf16.mxu0 %v502
    %1221 = vmatmul.mubr.bf16.gmra.mrb[0].mxu0 %v501
    %v1222 = vpop.f32.mrb[0].mxu0
    %v1223 = vadd.f32 %v283, %v1222
    %v1224 = vpop.f32.mrb[0].mxu0
    %v1225 = vadd.f32 %v287, %v1224
    %v1226 = vpop.f32.mrb[0].mxu0
    %v1227 = vadd.f32 %v283, %v1226
    %v1228 = vpop.f32.mrb[0].mxu0
    %v1229 = vadd.f32 %v287, %v1228
    %1230 = vmatprep.mubr.bf16.mxu0 %v509
    %1231 = vmatmul.mubr.bf16.gmra.mrb[0].mxu0 %v508
    %v1232 = vpop.f32.mrb[0].mxu0
    %v1233 = vadd.f32 %v283, %v1232
    %v1234 = vpop.f32.mrb[0].mxu0
    %v1235 = vadd.f32 %v287, %v1234
    %v1236 = vpop.f32.mrb[0].mxu0
    %v1237 = vadd.f32 %v283, %v1236
    %v1238 = vpop.f32.mrb[0].mxu0
    %v1239 = vadd.f32 %v287, %v1238
    %1240 = vmatprep.mubr.bf16.mxu0 %v516
    %1241 = vmatmul.mubr.bf16.gmra.mrb[0].mxu0 %v515
    %v1242 = vpop.f32.mrb[0].mxu0
    %v1243 = vadd.f32 %v283, %v1242
    %v1244 = vpop.f32.mrb[0].mxu0
    %v1245 = vadd.f32 %v287, %v1244
    %v1246 = vpop.f32.mrb[0].mxu0
    %v1247 = vadd.f32 %v283, %v1246
    %v1248 = vpop.f32.mrb[0].mxu0
    %v1249 = vadd.f32 %v287, %v1248
    %1250 = vdwg.mxu0
    %1251 = vmatprep.subr.bf16.mxu0 %v947
    %1252 = vmatpush1.bf16.msra.mxu0 %v946
    %1253 = vmatprep.subr.bf16.mxu0 %v949
    %1254 = vmatpush1.bf16.msra.mxu0 %v948
    %1255 = vmatprep.subr.bf16.mxu0 %v951
    %1256 = vmatpush1.bf16.msra.mxu0 %v950
    %1257 = vmatprep.subr.bf16.mxu0 %v953
    %1258 = vmatpush1.bf16.msra.mxu0 %v952
    %1259 = vmatprep.subr.bf16.mxu0 %v955
    %1260 = vmatpush1.bf16.msra.mxu0 %v954
    %1261 = vmatprep.subr.bf16.mxu0 %v957
    %1262 = vmatpush1.bf16.msra.mxu0 %v956
    %1263 = vmatprep.subr.bf16.mxu0 %v959
    %1264 = vmatpush1.bf16.msra.mxu0 %v958
    %1265 = vmatprep.subr.bf16.mxu0 %v961
    %1266 = vmatpush1.bf16.msra.mxu0 %v960
    %1267 = vmatprep.subr.bf16.mxu0 %v963
    %1268 = vmatpush1.bf16.msra.mxu0 %v962
    %1269 = vmatprep.subr.bf16.mxu0 %v965
    %1270 = vmatpush1.bf16.msra.mxu0 %v964
    %1271 = vmatprep.subr.bf16.mxu0 %v967
    %1272 = vmatpush1.bf16.msra.mxu0 %v966
    %1273 = vmatprep.subr.bf16.mxu0 %v969
    %1274 = vmatpush1.bf16.msra.mxu0 %v968
    %1275 = vmatprep.subr.bf16.mxu0 %v971
    %1276 = vmatpush1.bf16.msra.mxu0 %v970
    %1277 = vmatprep.subr.bf16.mxu0 %v973
    %1278 = vmatpush1.bf16.msra.mxu0 %v972
    %1279 = vmatprep.subr.bf16.mxu0 %v975
    %1280 = vmatpush1.bf16.msra.mxu0 %v974
    %1281 = vmatprep.subr.bf16.mxu0 %v977
    %1282 = vmatpush1.bf16.msra.mxu0 %v976
    %1283 = vmatprep.mubr.bf16.mxu0 %v469
    %1284 = vmatmul.mubr.bf16.gmra.mrb[0].mxu0 %v468
    %v1285 = vpop.f32.mrb[0].mxu0
    %v1286 = vadd.f32 %v1173, %v1285
    %v1287 = vpop.f32.mrb[0].mxu0
    %v1288 = vadd.f32 %v1175, %v1287
    %v1289 = vpop.f32.mrb[0].mxu0
    %v1290 = vadd.f32 %v1177, %v1289
    %v1291 = vpop.f32.mrb[0].mxu0
    %v1292 = vadd.f32 %v1179, %v1291
    %1293 = vmatprep.mubr.bf16.mxu0 %v476
    %1294 = vmatmul.mubr.bf16.gmra.mrb[0].mxu0 %v475
    %v1295 = vpop.f32.mrb[0].mxu0
    %v1296 = vadd.f32 %v1183, %v1295
    %v1297 = vpop.f32.mrb[0].mxu0
    %v1298 = vadd.f32 %v1185, %v1297
    %v1299 = vpop.f32.mrb[0].mxu0
    %v1300 = vadd.f32 %v1187, %v1299
    %v1301 = vpop.f32.mrb[0].mxu0
    %v1302 = vadd.f32 %v1189, %v1301
    %1303 = vmatprep.mubr.bf16.mxu0 %v483
    %1304 = vmatmul.mubr.bf16.gmra.mrb[0].mxu0 %v482
    %v1305 = vpop.f32.mrb[0].mxu0
    %v1306 = vadd.f32 %v1193, %v1305
    %v1307 = vpop.f32.mrb[0].mxu0
    %v1308 = vadd.f32 %v1195, %v1307
    %v1309 = vpop.f32.mrb[0].mxu0
    %v1310 = vadd.f32 %v1197, %v1309
    %v1311 = vpop.f32.mrb[0].mxu0
    %v1312 = vadd.f32 %v1199, %v1311
    %1313 = vmatprep.mubr.bf16.mxu0 %v490
    %1314 = vmatmul.mubr.bf16.gmra.mrb[0].mxu0 %v489
    %v1315 = vpop.f32.mrb[0].mxu0
    %v1316 = vadd.f32 %v1203, %v1315
    %v1317 = vpop.f32.mrb[0].mxu0
    %v1318 = vadd.f32 %v1205, %v1317
    %v1319 = vpop.f32.mrb[0].mxu0
    %v1320 = vadd.f32 %v1207, %v1319
    %v1321 = vpop.f32.mrb[0].mxu0
    %v1322 = vadd.f32 %v1209, %v1321
    %1323 = vmatprep.mubr.bf16.mxu0 %v497
    %1324 = vmatmul.mubr.bf16.gmra.mrb[0].mxu0 %v496
    %v1325 = vpop.f32.mrb[0].mxu0
    %v1326 = vadd.f32 %v1213, %v1325
    %v1327 = vpop.f32.mrb[0].mxu0
    %v1328 = vadd.f32 %v1215, %v1327
    %v1329 = vpop.f32.mrb[0].mxu0
    %v1330 = vadd.f32 %v1217, %v1329
    %v1331 = vpop.f32.mrb[0].mxu0
    %v1332 = vadd.f32 %v1219, %v1331
    %1333 = vmatprep.mubr.bf16.mxu0 %v504
    %1334 = vmatmul.mubr.bf16.gmra.mrb[0].mxu0 %v503
    %v1335 = vpop.f32.mrb[0].mxu0
    %v1336 = vadd.f32 %v1223, %v1335
    %v1337 = vpop.f32.mrb[0].mxu0
    %v1338 = vadd.f32 %v1225, %v1337
    %v1339 = vpop.f32.mrb[0].mxu0
    %v1340 = vadd.f32 %v1227, %v1339
    %v1341 = vpop.f32.mrb[0].mxu0
    %v1342 = vadd.f32 %v1229, %v1341
    %1343 = vmatprep.mubr.bf16.mxu0 %v511
    %1344 = vmatmul.mubr.bf16.gmra.mrb[0].mxu0 %v510
    %v1345 = vpop.f32.mrb[0].mxu0
    %v1346 = vadd.f32 %v1233, %v1345
    %v1347 = vpop.f32.mrb[0].mxu0
    %v1348 = vadd.f32 %v1235, %v1347
    %v1349 = vpop.f32.mrb[0].mxu0
    %v1350 = vadd.f32 %v1237, %v1349
    %v1351 = vpop.f32.mrb[0].mxu0
    %v1352 = vadd.f32 %v1239, %v1351
    %1353 = vmatprep.mubr.bf16.mxu0 %v518
    %1354 = vmatmul.mubr.bf16.gmra.mrb[0].mxu0 %v517
    %v1355 = vpop.f32.mrb[0].mxu0
    %v1356 = vadd.f32 %v1243, %v1355
    %v1357 = vpop.f32.mrb[0].mxu0
    %v1358 = vadd.f32 %v1245, %v1357
    %v1359 = vpop.f32.mrb[0].mxu0
    %v1360 = vadd.f32 %v1247, %v1359
    %v1361 = vpop.f32.mrb[0].mxu0
    %v1362 = vadd.f32 %v1249, %v1361
    %1363 = vdwg.mxu0
    %1364 = vmatprep.subr.bf16.mxu0 %v979
    %1365 = vmatpush1.bf16.msra.mxu0 %v978
    %1366 = vmatprep.subr.bf16.mxu0 %v981
    %1367 = vmatpush1.bf16.msra.mxu0 %v980
    %1368 = vmatprep.subr.bf16.mxu0 %v983
    %1369 = vmatpush1.bf16.msra.mxu0 %v982
    %1370 = vmatprep.subr.bf16.mxu0 %v985
    %1371 = vmatpush1.bf16.msra.mxu0 %v984
    %1372 = vmatprep.subr.bf16.mxu0 %v987
    %1373 = vmatpush1.bf16.msra.mxu0 %v986
    %1374 = vmatprep.subr.bf16.mxu0 %v989
    %1375 = vmatpush1.bf16.msra.mxu0 %v988
    %1376 = vmatprep.subr.bf16.mxu0 %v991
    %1377 = vmatpush1.bf16.msra.mxu0 %v990
    %1378 = vmatprep.subr.bf16.mxu0 %v993
    %1379 = vmatpush1.bf16.msra.mxu0 %v992
    %1380 = vmatprep.subr.bf16.mxu0 %v995
    %1381 = vmatpush1.bf16.msra.mxu0 %v994
    %1382 = vmatprep.subr.bf16.mxu0 %v997
    %1383 = vmatpush1.bf16.msra.mxu0 %v996
    %1384 = vmatprep.subr.bf16.mxu0 %v999
    %1385 = vmatpush1.bf16.msra.mxu0 %v998
    %1386 = vmatprep.subr.bf16.mxu0 %v1001
    %1387 = vmatpush1.bf16.msra.mxu0 %v1000
    %1388 = vmatprep.subr.bf16.mxu0 %v1003
    %1389 = vmatpush1.bf16.msra.mxu0 %v1002
    %1390 = vmatprep.subr.bf16.mxu0 %v1005
    %1391 = vmatpush1.bf16.msra.mxu0 %v1004
    %1392 = vmatprep.subr.bf16.mxu0 %v1007
    %1393 = vmatpush1.bf16.msra.mxu0 %v1006
    %1394 = vmatprep.subr.bf16.mxu0 %v1009
    %1395 = vmatpush1.bf16.msra.mxu0 %v1008
    %1396 = vmatprep.mubr.bf16.mxu0 %v471
    %1397 = vmatmul.mubr.bf16.gmra.mrb[0].mxu0 %v470
    %v1398 = vpop.f32.mrb[0].mxu0
    %v1399 = vadd.f32 %v1286, %v1398
    %v1400 = vpop.f32.mrb[0].mxu0
    %v1401 = vadd.f32 %v1288, %v1400
    %v1402 = vpop.f32.mrb[0].mxu0
    %v1403 = vadd.f32 %v1290, %v1402
    %v1404 = vpop.f32.mrb[0].mxu0
    %v1405 = vadd.f32 %v1292, %v1404
    %1406 = vmatprep.mubr.bf16.mxu0 %v478
    %1407 = vmatmul.mubr.bf16.gmra.mrb[0].mxu0 %v477
    %v1408 = vpop.f32.mrb[0].mxu0
    %v1409 = vadd.f32 %v1296, %v1408
    %v1410 = vpop.f32.mrb[0].mxu0
    %v1411 = vadd.f32 %v1298, %v1410
    %v1412 = vpop.f32.mrb[0].mxu0
    %v1413 = vadd.f32 %v1300, %v1412
    %v1414 = vpop.f32.mrb[0].mxu0
    %v1415 = vadd.f32 %v1302, %v1414
    %1416 = vmatprep.mubr.bf16.mxu0 %v485
    %1417 = vmatmul.mubr.bf16.gmra.mrb[0].mxu0 %v484
    %v1418 = vpop.f32.mrb[0].mxu0
    %v1419 = vadd.f32 %v1306, %v1418
    %v1420 = vpop.f32.mrb[0].mxu0
    %v1421 = vadd.f32 %v1308, %v1420
    %v1422 = vpop.f32.mrb[0].mxu0
    %v1423 = vadd.f32 %v1310, %v1422
    %v1424 = vpop.f32.mrb[0].mxu0
    %v1425 = vadd.f32 %v1312, %v1424
    %1426 = vmatprep.mubr.bf16.mxu0 %v492
    %1427 = vmatmul.mubr.bf16.gmra.mrb[0].mxu0 %v491
    %v1428 = vpop.f32.mrb[0].mxu0
    %v1429 = vadd.f32 %v1316, %v1428
    %v1430 = vpop.f32.mrb[0].mxu0
    %v1431 = vadd.f32 %v1318, %v1430
    %v1432 = vpop.f32.mrb[0].mxu0
    %v1433 = vadd.f32 %v1320, %v1432
    %v1434 = vpop.f32.mrb[0].mxu0
    %v1435 = vadd.f32 %v1322, %v1434
    %1436 = vmatprep.mubr.bf16.mxu0 %v499
    %1437 = vmatmul.mubr.bf16.gmra.mrb[0].mxu0 %v498
    %v1438 = vpop.f32.mrb[0].mxu0
    %v1439 = vadd.f32 %v1326, %v1438
    %v1440 = vpop.f32.mrb[0].mxu0
    %v1441 = vadd.f32 %v1328, %v1440
    %v1442 = vpop.f32.mrb[0].mxu0
    %v1443 = vadd.f32 %v1330, %v1442
    %v1444 = vpop.f32.mrb[0].mxu0
    %v1445 = vadd.f32 %v1332, %v1444
    %1446 = vmatprep.mubr.bf16.mxu0 %v506
    %1447 = vmatmul.mubr.bf16.gmra.mrb[0].mxu0 %v505
    %v1448 = vpop.f32.mrb[0].mxu0
    %v1449 = vadd.f32 %v1336, %v1448
    %v1450 = vpop.f32.mrb[0].mxu0
    %v1451 = vadd.f32 %v1338, %v1450
    %v1452 = vpop.f32.mrb[0].mxu0
    %v1453 = vadd.f32 %v1340, %v1452
    %v1454 = vpop.f32.mrb[0].mxu0
    %v1455 = vadd.f32 %v1342, %v1454
    %1456 = vmatprep.mubr.bf16.mxu0 %v513
    %1457 = vmatmul.mubr.bf16.gmra.mrb[0].mxu0 %v512
    %v1458 = vpop.f32.mrb[0].mxu0
    %v1459 = vadd.f32 %v1346, %v1458
    %v1460 = vpop.f32.mrb[0].mxu0
    %v1461 = vadd.f32 %v1348, %v1460
    %v1462 = vpop.f32.mrb[0].mxu0
    %v1463 = vadd.f32 %v1350, %v1462
    %v1464 = vpop.f32.mrb[0].mxu0
    %v1465 = vadd.f32 %v1352, %v1464
    %1466 = vmatprep.mubr.bf16.mxu0 %v520
    %1467 = vmatmul.mubr.bf16.gmra.mrb[0].mxu0 %v519
    %v1468 = vpop.f32.mrb[0].mxu0
    %v1469 = vadd.f32 %v1356, %v1468
    %v1470 = vpop.f32.mrb[0].mxu0
    %v1471 = vadd.f32 %v1358, %v1470
    %v1472 = vpop.f32.mrb[0].mxu0
    %v1473 = vadd.f32 %v1360, %v1472
    %v1474 = vpop.f32.mrb[0].mxu0
    %v1475 = vadd.f32 %v1362, %v1474
    %1476 = vdwg.mxu0
    %1477 = vmatprep.subr.bf16.mxu0 %v1011
    %1478 = vmatpush1.bf16.msra.mxu0 %v1010
    %1479 = vmatprep.subr.bf16.mxu0 %v1013
    %1480 = vmatpush1.bf16.msra.mxu0 %v1012
    %1481 = vmatprep.subr.bf16.mxu0 %v1015
    %1482 = vmatpush1.bf16.msra.mxu0 %v1014
    %1483 = vmatprep.subr.bf16.mxu0 %v1017
    %1484 = vmatpush1.bf16.msra.mxu0 %v1016
    %1485 = vmatprep.subr.bf16.mxu0 %v1019
    %1486 = vmatpush1.bf16.msra.mxu0 %v1018
    %1487 = vmatprep.subr.bf16.mxu0 %v1021
    %1488 = vmatpush1.bf16.msra.mxu0 %v1020
    %1489 = vmatprep.subr.bf16.mxu0 %v1023
    %1490 = vmatpush1.bf16.msra.mxu0 %v1022
    %1491 = vmatprep.subr.bf16.mxu0 %v1025
    %1492 = vmatpush1.bf16.msra.mxu0 %v1024
    %1493 = vmatprep.subr.bf16.mxu0 0
    %1494 = vmatpush1.bf16.msra.mxu0 0
    %1495 = vmatprep.subr.bf16.mxu0 0
    %1496 = vmatpush1.bf16.msra.mxu0 0
    %1497 = vmatprep.subr.bf16.mxu0 0
    %1498 = vmatpush1.bf16.msra.mxu0 0
    %1499 = vmatprep.subr.bf16.mxu0 0
    %1500 = vmatpush1.bf16.msra.mxu0 0
    %1501 = vmatprep.subr.bf16.mxu0 0
    %1502 = vmatpush1.bf16.msra.mxu0 0
    %1503 = vmatprep.subr.bf16.mxu0 0
    %1504 = vmatpush1.bf16.msra.mxu0 0
    %1505 = vmatprep.subr.bf16.mxu0 0
    %1506 = vmatpush1.bf16.msra.mxu0 0
    %1507 = vmatprep.subr.bf16.mxu0 0
    %1508 = vmatpush1.bf16.msra.mxu0 0
    %1509 = vmatprep.mubr.bf16.mxu0 0
    %1510 = vmatmul.mubr.bf16.gmra.mrb[0].mxu0 %v472
    %v1511 = vpop.f32.mrb[0].mxu0
    %v1512 = vadd.f32 %v1399, %v1511
    %v1513 = vpop.f32.mrb[0].mxu0
    %v1514 = vadd.f32 %v1401, %v1513
    %v1515 = vpop.f32.mrb[0].mxu0
    %v1516 = vadd.f32 %v1403, %v1515
    %v1517 = vpop.f32.mrb[0].mxu0
    %v1518 = vadd.f32 %v1405, %v1517
    %1519 = vmatprep.mubr.bf16.mxu0 0
    %1520 = vmatmul.mubr.bf16.gmra.mrb[0].mxu0 %v479
    %v1521 = vpop.f32.mrb[0].mxu0
    %v1522 = vadd.f32 %v1409, %v1521
    %v1523 = vpop.f32.mrb[0].mxu0
    %v1524 = vadd.f32 %v1411, %v1523
    %v1525 = vpop.f32.mrb[0].mxu0
    %v1526 = vadd.f32 %v1413, %v1525
    %v1527 = vpop.f32.mrb[0].mxu0
    %v1528 = vadd.f32 %v1415, %v1527
    %1529 = vmatprep.mubr.bf16.mxu0 0
    %1530 = vmatmul.mubr.bf16.gmra.mrb[0].mxu0 %v486
    %v1531 = vpop.f32.mrb[0].mxu0
    %v1532 = vadd.f32 %v1419, %v1531
    %v1533 = vpop.f32.mrb[0].mxu0
    %v1534 = vadd.f32 %v1421, %v1533
    %v1535 = vpop.f32.mrb[0].mxu0
    %v1536 = vadd.f32 %v1423, %v1535
    %v1537 = vpop.f32.mrb[0].mxu0
    %v1538 = vadd.f32 %v1425, %v1537
    %1539 = vmatprep.mubr.bf16.mxu0 0
    %1540 = vmatmul.mubr.bf16.gmra.mrb[0].mxu0 %v493
    %v1541 = vpop.f32.mrb[0].mxu0
    %v1542 = vadd.f32 %v1429, %v1541
    %v1543 = vpop.f32.mrb[0].mxu0
    %v1544 = vadd.f32 %v1431, %v1543
    %v1545 = vpop.f32.mrb[0].mxu0
    %v1546 = vadd.f32 %v1433, %v1545
    %v1547 = vpop.f32.mrb[0].mxu0
    %v1548 = vadd.f32 %v1435, %v1547
    %1549 = vmatprep.mubr.bf16.mxu0 0
    %1550 = vmatmul.mubr.bf16.gmra.mrb[0].mxu0 %v500
    %v1551 = vpop.f32.mrb[0].mxu0
    %v1552 = vadd.f32 %v1439, %v1551
    %v1553 = vpop.f32.mrb[0].mxu0
    %v1554 = vadd.f32 %v1441, %v1553
    %v1555 = vpop.f32.mrb[0].mxu0
    %v1556 = vadd.f32 %v1443, %v1555
    %v1557 = vpop.f32.mrb[0].mxu0
    %v1558 = vadd.f32 %v1445, %v1557
    %1559 = vmatprep.mubr.bf16.mxu0 0
    %1560 = vmatmul.mubr.bf16.gmra.mrb[0].mxu0 %v507
    %v1561 = vpop.f32.mrb[0].mxu0
    %v1562 = vadd.f32 %v1449, %v1561
    %v1563 = vpop.f32.mrb[0].mxu0
    %v1564 = vadd.f32 %v1451, %v1563
    %v1565 = vpop.f32.mrb[0].mxu0
    %v1566 = vadd.f32 %v1453, %v1565
    %v1567 = vpop.f32.mrb[0].mxu0
    %v1568 = vadd.f32 %v1455, %v1567
    %1569 = vmatprep.mubr.bf16.mxu0 0
    %1570 = vmatmul.mubr.bf16.gmra.mrb[0].mxu0 %v514
    %v1571 = vpop.f32.mrb[0].mxu0
    %v1572 = vadd.f32 %v1459, %v1571
    %v1573 = vpop.f32.mrb[0].mxu0
    %v1574 = vadd.f32 %v1461, %v1573
    %v1575 = vpop.f32.mrb[0].mxu0
    %v1576 = vadd.f32 %v1463, %v1575
    %v1577 = vpop.f32.mrb[0].mxu0
    %v1578 = vadd.f32 %v1465, %v1577
    %1579 = vmatprep.mubr.bf16.mxu0 0
    %1580 = vmatmul.mubr.bf16.gmra.mrb[0].mxu0 %v521
    %v1581 = vpop.f32.mrb[0].mxu0
    %v1582 = vadd.f32 %v1469, %v1581
    %v1583 = vpop.f32.mrb[0].mxu0
    %v1584 = vadd.f32 %v1471, %v1583
    %v1585 = vpop.f32.mrb[0].mxu0
    %v1586 = vadd.f32 %v1473, %v1585
    %v1587 = vpop.f32.mrb[0].mxu0
    %v1588 = vadd.f32 %v1475, %v1587
    %1589 = vdwg.mxu0
    %v1590 = vmax.f32 %v1512, 0.0
    %v1591 = vmax.f32 %v1514, 0.0
    %v1592 = vmax.f32 %v1516, 0.0
    %v1593 = vmax.f32 %v1518, 0.0
    %v1594 = vmax.f32 %v1522, 0.0
    %v1595 = vmax.f32 %v1524, 0.0
    %v1596 = vmax.f32 %v1526, 0.0
    %v1597 = vmax.f32 %v1528, 0.0
    %v1598 = vmax.f32 %v1532, 0.0
    %v1599 = vmax.f32 %v1534, 0.0
    %v1600 = vmax.f32 %v1536, 0.0
    %v1601 = vmax.f32 %v1538, 0.0
    %v1602 = vmax.f32 %v1542, 0.0
    %v1603 = vmax.f32 %v1544, 0.0
    %v1604 = vmax.f32 %v1546, 0.0
    %v1605 = vmax.f32 %v1548, 0.0
    %v1606 = vmax.f32 %v1552, 0.0
    %v1607 = vmax.f32 %v1554, 0.0
    %v1608 = vmax.f32 %v1556, 0.0
    %v1609 = vmax.f32 %v1558, 0.0
    %v1610 = vmax.f32 %v1562, 0.0
    %v1611 = vmax.f32 %v1564, 0.0
    %v1612 = vmax.f32 %v1566, 0.0
    %v1613 = vmax.f32 %v1568, 0.0
    %v1614 = vmax.f32 %v1572, 0.0
    %v1615 = vmax.f32 %v1574, 0.0
    %v1616 = vmax.f32 %v1576, 0.0
    %v1617 = vmax.f32 %v1578, 0.0
    %v1618 = vmax.f32 %v1582, 0.0
    %v1619 = vmax.f32 %v1584, 0.0
    %v1620 = vmax.f32 %v1586, 0.0
    %v1621 = vmax.f32 %v1588, 0.0
    %v1622 = vpack.c.bf16 %v1592, %v1590
    %v1623 = vpack.c.bf16 %v1593, %v1591
    %v1624 = vpack.c.bf16 %v1596, %v1594
    %v1625 = vpack.c.bf16 %v1597, %v1595
    %v1626 = vpack.c.bf16 %v1600, %v1598
    %v1627 = vpack.c.bf16 %v1601, %v1599
    %v1628 = vpack.c.bf16 %v1604, %v1602
    %v1629 = vpack.c.bf16 %v1605, %v1603
    %v1630 = vpack.c.bf16 %v1608, %v1606
    %v1631 = vpack.c.bf16 %v1609, %v1607
    %v1632 = vpack.c.bf16 %v1612, %v1610
    %v1633 = vpack.c.bf16 %v1613, %v1611
    %v1634 = vpack.c.bf16 %v1616, %v1614
    %v1635 = vpack.c.bf16 %v1617, %v1615
    %v1636 = vpack.c.bf16 %v1620, %v1618
    %v1637 = vpack.c.bf16 %v1621, %v1619
    %v1638 = vld [vmem:[#allocation7] sm:$0xff]
    %v1639 = vld [vmem:[#allocation7 + $0x8] sm:$0xff]
    %v1640 = vld [vmem:[#allocation7 + $0x10] sm:$0xff]
    %v1641 = vld [vmem:[#allocation7 + $0x18] sm:$0xff]
    %v1642 = vld [vmem:[#allocation7 + $0x20] sm:$0xff]
    %v1643 = vld [vmem:[#allocation7 + $0x28] sm:$0xff]
    %v1644 = vld [vmem:[#allocation7 + $0x30] sm:$0xff]
    %v1645 = vld [vmem:[#allocation7 + $0x38] sm:$0xff]
    %v1646 = vld [vmem:[#allocation7 + $0x40] sm:$0xff]
    %v1647 = vld [vmem:[#allocation7 + $0x48] sm:$0xff]
    %v1648 = vld [vmem:[#allocation7 + $0x50] sm:$0xff]
    %v1649 = vld [vmem:[#allocation7 + $0x58] sm:$0xff]
    %v1650 = vld [vmem:[#allocation7 + $0x60] sm:$0xff]
    %v1651 = vld [vmem:[#allocation7 + $0x68] sm:$0xff]
    %v1652 = vld [vmem:[#allocation7 + $0x70] sm:$0xff]
    %v1653 = vld [vmem:[#allocation7 + $0x78] sm:$0xff]
    %v1654 = vld [vmem:[#allocation7 + $0x80] sm:$0xff]
    %v1655 = vld [vmem:[#allocation7 + $0x88] sm:$0xff]
    %v1656 = vld [vmem:[#allocation7 + $0x90] sm:$0xff]
    %v1657 = vld [vmem:[#allocation7 + $0x98] sm:$0xff]
    %v1658 = vld [vmem:[#allocation7 + $0xa0] sm:$0xff]
    %v1659 = vld [vmem:[#allocation7 + $0xa8] sm:$0xff]
    %v1660 = vld [vmem:[#allocation7 + $0xb0] sm:$0xff]
    %v1661 = vld [vmem:[#allocation7 + $0xb8] sm:$0xff]
    %v1662 = vld [vmem:[#allocation7 + $0xc0] sm:$0xff]
    %v1663 = vld [vmem:[#allocation7 + $0xc8] sm:$0xff]
    %v1664 = vld [vmem:[#allocation7 + $0xd0] sm:$0xff]
    %v1665 = vld [vmem:[#allocation7 + $0xd8] sm:$0xff]
    %v1666 = vld [vmem:[#allocation7 + $0xe0] sm:$0xff]
    %v1667 = vld [vmem:[#allocation7 + $0xe8] sm:$0xff]
    %v1668 = vld [vmem:[#allocation7 + $0xf0] sm:$0xff]
    %v1669 = vld [vmem:[#allocation7 + $0xf8] sm:$0xff]
    %v1670 = vld [vmem:[%s4] sm:$0x3]
    %v1672 = vlaneseq
    %v1673 = vshrl.u32 %v1672, 7
    %v1674 = vsub.s32 0, %v1673
    %v1675 = vrot.slane %v1670, %v1674
    %v1676 = vlaneseq
    %v1677 = vshrl.u32 %v1676, 7
    %v1678 = vsub.s32 1, %v1677
    %v1679 = vrot.slane %v1670, %v1678
    %v1714 = vunpack.c.l.b16 %v1638
    %v1715 = vunpack.c.h.b16 %v1638
    %v1716 = vunpack.c.l.b16 %v1639
    %v1717 = vunpack.c.h.b16 %v1639
    %v1718 = vunpack.c.l.b16 %v1640
    %v1719 = vunpack.c.h.b16 %v1640
    %v1720 = vunpack.c.l.b16 %v1641
    %v1721 = vunpack.c.h.b16 %v1641
    %v1722 = vunpack.c.l.b16 %v1642
    %v1723 = vunpack.c.h.b16 %v1642
    %v1724 = vunpack.c.l.b16 %v1643
    %v1725 = vunpack.c.h.b16 %v1643
    %v1726 = vunpack.c.l.b16 %v1644
    %v1727 = vunpack.c.h.b16 %v1644
    %v1728 = vunpack.c.l.b16 %v1645
    %v1729 = vunpack.c.h.b16 %v1645
    %v1730 = vunpack.c.l.b16 %v1646
    %v1731 = vunpack.c.h.b16 %v1646
    %v1732 = vunpack.c.l.b16 %v1647
    %v1733 = vunpack.c.h.b16 %v1647
    %v1734 = vunpack.c.l.b16 %v1648
    %v1735 = vunpack.c.h.b16 %v1648
    %v1736 = vunpack.c.l.b16 %v1649
    %v1737 = vunpack.c.h.b16 %v1649
    %v1738 = vunpack.c.l.b16 %v1650
    %v1739 = vunpack.c.h.b16 %v1650
    %v1740 = vunpack.c.l.b16 %v1651
    %v1741 = vunpack.c.h.b16 %v1651
    %v1742 = vunpack.c.l.b16 %v1652
    %v1743 = vunpack.c.h.b16 %v1652
    %v1744 = vunpack.c.l.b16 %v1653
    %v1745 = vunpack.c.h.b16 %v1653
    %v1746 = vunpack.c.l.b16 %v1654
    %v1747 = vunpack.c.h.b16 %v1654
    %v1748 = vunpack.c.l.b16 %v1655
    %v1749 = vunpack.c.h.b16 %v1655
    %v1750 = vunpack.c.l.b16 %v1656
    %v1751 = vunpack.c.h.b16 %v1656
    %v1752 = vunpack.c.l.b16 %v1657
    %v1753 = vunpack.c.h.b16 %v1657
    %v1754 = vunpack.c.l.b16 %v1658
    %v1755 = vunpack.c.h.b16 %v1658
    %v1756 = vunpack.c.l.b16 %v1659
    %v1757 = vunpack.c.h.b16 %v1659
    %v1758 = vunpack.c.l.b16 %v1660
    %v1759 = vunpack.c.h.b16 %v1660
    %v1760 = vunpack.c.l.b16 %v1661
    %v1761 = vunpack.c.h.b16 %v1661
    %v1762 = vunpack.c.l.b16 %v1662
    %v1763 = vunpack.c.h.b16 %v1662
    %v1764 = vunpack.c.l.b16 %v1663
    %v1765 = vunpack.c.h.b16 %v1663
    %v1766 = vunpack.c.l.b16 %v1664
    %v1767 = vunpack.c.h.b16 %v1664
    %v1768 = vunpack.c.l.b16 %v1665
    %v1769 = vunpack.c.h.b16 %v1665
    %v1770 = vunpack.c.l.b16 %v1666
    %v1771 = vunpack.c.h.b16 %v1666
    %v1772 = vunpack.c.l.b16 %v1667
    %v1773 = vunpack.c.h.b16 %v1667
    %v1774 = vunpack.c.l.b16 %v1668
    %v1775 = vunpack.c.h.b16 %v1668
    %v1776 = vunpack.c.l.b16 %v1669
    %v1777 = vunpack.c.h.b16 %v1669
    %v1778 = vpack.c.b16 %v1716, %v1714
    %v1779 = vpack.c.b16 %v1717, %v1715
    %v1780 = vpack.c.b16 %v1720, %v1718
    %v1781 = vpack.c.b16 %v1721, %v1719
    %v1782 = vpack.c.b16 %v1724, %v1722
    %v1783 = vpack.c.b16 %v1725, %v1723
    %v1784 = vpack.c.b16 %v1728, %v1726
    %v1785 = vpack.c.b16 %v1729, %v1727
    %v1786 = vpack.c.b16 %v1732, %v1730
    %v1787 = vpack.c.b16 %v1733, %v1731
    %v1788 = vpack.c.b16 %v1736, %v1734
    %v1789 = vpack.c.b16 %v1737, %v1735
    %v1790 = vpack.c.b16 %v1740, %v1738
    %v1791 = vpack.c.b16 %v1741, %v1739
    %v1792 = vpack.c.b16 %v1744, %v1742
    %v1793 = vpack.c.b16 %v1745, %v1743
    %v1794 = vpack.c.b16 %v1748, %v1746
    %v1795 = vpack.c.b16 %v1749, %v1747
    %v1796 = vpack.c.b16 %v1752, %v1750
    %v1797 = vpack.c.b16 %v1753, %v1751
    %v1798 = vpack.c.b16 %v1756, %v1754
    %v1799 = vpack.c.b16 %v1757, %v1755
    %v1800 = vpack.c.b16 %v1760, %v1758
    %v1801 = vpack.c.b16 %v1761, %v1759
    %v1802 = vpack.c.b16 %v1764, %v1762
    %v1803 = vpack.c.b16 %v1765, %v1763
    %v1804 = vpack.c.b16 %v1768, %v1766
    %v1805 = vpack.c.b16 %v1769, %v1767
    %v1806 = vpack.c.b16 %v1772, %v1770
    %v1807 = vpack.c.b16 %v1773, %v1771
    %v1808 = vpack.c.b16 %v1776, %v1774
    %v1809 = vpack.c.b16 %v1777, %v1775
    %1842 = vmatprep.subr.bf16.mxu0 %v1779
    %1843 = vmatpush1.bf16.msra.mxu0 %v1778
    %1844 = vmatprep.subr.bf16.mxu0 %v1781
    %1845 = vmatpush1.bf16.msra.mxu0 %v1780
    %1846 = vmatprep.subr.bf16.mxu0 %v1783
    %1847 = vmatpush1.bf16.msra.mxu0 %v1782
    %1848 = vmatprep.subr.bf16.mxu0 %v1785
    %1849 = vmatpush1.bf16.msra.mxu0 %v1784
    %1850 = vmatprep.subr.bf16.mxu0 %v1787
    %1851 = vmatpush1.bf16.msra.mxu0 %v1786
    %1852 = vmatprep.subr.bf16.mxu0 %v1789
    %1853 = vmatpush1.bf16.msra.mxu0 %v1788
    %1854 = vmatprep.subr.bf16.mxu0 %v1791
    %1855 = vmatpush1.bf16.msra.mxu0 %v1790
    %1856 = vmatprep.subr.bf16.mxu0 %v1793
    %1857 = vmatpush1.bf16.msra.mxu0 %v1792
    %1858 = vmatprep.subr.bf16.mxu0 %v1795
    %1859 = vmatpush1.bf16.msra.mxu0 %v1794
    %1860 = vmatprep.subr.bf16.mxu0 %v1797
    %1861 = vmatpush1.bf16.msra.mxu0 %v1796
    %1862 = vmatprep.subr.bf16.mxu0 %v1799
    %1863 = vmatpush1.bf16.msra.mxu0 %v1798
    %1864 = vmatprep.subr.bf16.mxu0 %v1801
    %1865 = vmatpush1.bf16.msra.mxu0 %v1800
    %1866 = vmatprep.subr.bf16.mxu0 %v1803
    %1867 = vmatpush1.bf16.msra.mxu0 %v1802
    %1868 = vmatprep.subr.bf16.mxu0 %v1805
    %1869 = vmatpush1.bf16.msra.mxu0 %v1804
    %1870 = vmatprep.subr.bf16.mxu0 %v1807
    %1871 = vmatpush1.bf16.msra.mxu0 %v1806
    %1872 = vmatprep.subr.bf16.mxu0 %v1809
    %1873 = vmatpush1.bf16.msra.mxu0 %v1808
    %1874 = vmatprep.mubr.bf16.mxu0 %v1623
    %1875 = vmatmul.mubr.bf16.gmra.mrb[0].mxu0 %v1622
    %v1876 = vpop.f32.mrb[0].mxu0
    %v1877 = vadd.f32 %v1675, %v1876
    %v1878 = vpop.f32.mrb[0].mxu0
    %v1879 = vadd.f32 %v1679, %v1878
    %v1880 = vpop.f32.mrb[0].mxu0
    %v1881 = vadd.f32 %v1675, %v1880
    %v1882 = vpop.f32.mrb[0].mxu0
    %v1883 = vadd.f32 %v1679, %v1882
    %1884 = vmatprep.mubr.bf16.mxu0 %v1625
    %1885 = vmatmul.mubr.bf16.gmra.mrb[0].mxu0 %v1624
    %v1886 = vpop.f32.mrb[0].mxu0
    %v1887 = vadd.f32 %v1675, %v1886
    %v1888 = vpop.f32.mrb[0].mxu0
    %v1889 = vadd.f32 %v1679, %v1888
    %v1890 = vpop.f32.mrb[0].mxu0
    %v1891 = vadd.f32 %v1675, %v1890
    %v1892 = vpop.f32.mrb[0].mxu0
    %v1893 = vadd.f32 %v1679, %v1892
    %1894 = vmatprep.mubr.bf16.mxu0 %v1627
    %1895 = vmatmul.mubr.bf16.gmra.mrb[0].mxu0 %v1626
    %v1896 = vpop.f32.mrb[0].mxu0
    %v1897 = vadd.f32 %v1675, %v1896
    %v1898 = vpop.f32.mrb[0].mxu0
    %v1899 = vadd.f32 %v1679, %v1898
    %v1900 = vpop.f32.mrb[0].mxu0
    %v1901 = vadd.f32 %v1675, %v1900
    %v1902 = vpop.f32.mrb[0].mxu0
    %v1903 = vadd.f32 %v1679, %v1902
    %1904 = vmatprep.mubr.bf16.mxu0 %v1629
    %1905 = vmatmul.mubr.bf16.gmra.mrb[0].mxu0 %v1628
    %v1906 = vpop.f32.mrb[0].mxu0
    %v1907 = vadd.f32 %v1675, %v1906
    %v1908 = vpop.f32.mrb[0].mxu0
    %v1909 = vadd.f32 %v1679, %v1908
    %v1910 = vpop.f32.mrb[0].mxu0
    %v1911 = vadd.f32 %v1675, %v1910
    %v1912 = vpop.f32.mrb[0].mxu0
    %v1913 = vadd.f32 %v1679, %v1912
    %1914 = vmatprep.mubr.bf16.mxu0 %v1631
    %1915 = vmatmul.mubr.bf16.gmra.mrb[0].mxu0 %v1630
    %v1916 = vpop.f32.mrb[0].mxu0
    %v1917 = vadd.f32 %v1675, %v1916
    %v1918 = vpop.f32.mrb[0].mxu0
    %v1919 = vadd.f32 %v1679, %v1918
    %v1920 = vpop.f32.mrb[0].mxu0
    %v1921 = vadd.f32 %v1675, %v1920
    %v1922 = vpop.f32.mrb[0].mxu0
    %v1923 = vadd.f32 %v1679, %v1922
    %1924 = vmatprep.mubr.bf16.mxu0 %v1633
    %1925 = vmatmul.mubr.bf16.gmra.mrb[0].mxu0 %v1632
    %v1926 = vpop.f32.mrb[0].mxu0
    %v1927 = vadd.f32 %v1675, %v1926
    %v1928 = vpop.f32.mrb[0].mxu0
    %v1929 = vadd.f32 %v1679, %v1928
    %v1930 = vpop.f32.mrb[0].mxu0
    %v1931 = vadd.f32 %v1675, %v1930
    %v1932 = vpop.f32.mrb[0].mxu0
    %v1933 = vadd.f32 %v1679, %v1932
    %1934 = vmatprep.mubr.bf16.mxu0 %v1635
    %1935 = vmatmul.mubr.bf16.gmra.mrb[0].mxu0 %v1634
    %v1936 = vpop.f32.mrb[0].mxu0
    %v1937 = vadd.f32 %v1675, %v1936
    %v1938 = vpop.f32.mrb[0].mxu0
    %v1939 = vadd.f32 %v1679, %v1938
    %v1940 = vpop.f32.mrb[0].mxu0
    %v1941 = vadd.f32 %v1675, %v1940
    %v1942 = vpop.f32.mrb[0].mxu0
    %v1943 = vadd.f32 %v1679, %v1942
    %1944 = vmatprep.mubr.bf16.mxu0 %v1637
    %1945 = vmatmul.mubr.bf16.gmra.mrb[0].mxu0 %v1636
    %v1946 = vpop.f32.mrb[0].mxu0
    %v1947 = vadd.f32 %v1675, %v1946
    %v1948 = vpop.f32.mrb[0].mxu0
    %v1949 = vadd.f32 %v1679, %v1948
    %v1950 = vpop.f32.mrb[0].mxu0
    %v1951 = vadd.f32 %v1675, %v1950
    %v1952 = vpop.f32.mrb[0].mxu0
    %v1953 = vadd.f32 %v1679, %v1952
    %1954 = vdwg.mxu0
    %v1955 = vmax.f32 %v1877, 0.0
    %v1956 = vmax.f32 %v1879, 0.0
    %v1957 = vmax.f32 %v1881, 0.0
    %v1958 = vmax.f32 %v1883, 0.0
    %v1959 = vmax.f32 %v1887, 0.0
    %v1960 = vmax.f32 %v1889, 0.0
    %v1961 = vmax.f32 %v1891, 0.0
    %v1962 = vmax.f32 %v1893, 0.0
    %v1963 = vmax.f32 %v1897, 0.0
    %v1964 = vmax.f32 %v1899, 0.0
    %v1965 = vmax.f32 %v1901, 0.0
    %v1966 = vmax.f32 %v1903, 0.0
    %v1967 = vmax.f32 %v1907, 0.0
    %v1968 = vmax.f32 %v1909, 0.0
    %v1969 = vmax.f32 %v1911, 0.0
    %v1970 = vmax.f32 %v1913, 0.0
    %v1971 = vmax.f32 %v1917, 0.0
    %v1972 = vmax.f32 %v1919, 0.0
    %v1973 = vmax.f32 %v1921, 0.0
    %v1974 = vmax.f32 %v1923, 0.0
    %v1975 = vmax.f32 %v1927, 0.0
    %v1976 = vmax.f32 %v1929, 0.0
    %v1977 = vmax.f32 %v1931, 0.0
    %v1978 = vmax.f32 %v1933, 0.0
    %v1979 = vmax.f32 %v1937, 0.0
    %v1980 = vmax.f32 %v1939, 0.0
    %v1981 = vmax.f32 %v1941, 0.0
    %v1982 = vmax.f32 %v1943, 0.0
    %v1983 = vmax.f32 %v1947, 0.0
    %v1984 = vmax.f32 %v1949, 0.0
    %v1985 = vmax.f32 %v1951, 0.0
    %v1986 = vmax.f32 %v1953, 0.0
    %v1987 = vpack.c.bf16 %v1957, %v1955
    %v1988 = vpack.c.bf16 %v1958, %v1956
    %v1989 = vpack.c.bf16 %v1961, %v1959
    %v1990 = vpack.c.bf16 %v1962, %v1960
    %v1991 = vpack.c.bf16 %v1965, %v1963
    %v1992 = vpack.c.bf16 %v1966, %v1964
    %v1993 = vpack.c.bf16 %v1969, %v1967
    %v1994 = vpack.c.bf16 %v1970, %v1968
    %v1995 = vpack.c.bf16 %v1973, %v1971
    %v1996 = vpack.c.bf16 %v1974, %v1972
    %v1997 = vpack.c.bf16 %v1977, %v1975
    %v1998 = vpack.c.bf16 %v1978, %v1976
    %v1999 = vpack.c.bf16 %v1981, %v1979
    %v2000 = vpack.c.bf16 %v1982, %v1980
    %v2001 = vpack.c.bf16 %v1985, %v1983
    %v2002 = vpack.c.bf16 %v1986, %v1984
    %v2003 = vld [vmem:[#allocation8] sm:$0xff]
    %v2004 = vld [vmem:[#allocation8 + $0x8] sm:$0xff]
    %v2005 = vld [vmem:[#allocation8 + $0x10] sm:$0xff]
    %v2006 = vld [vmem:[#allocation8 + $0x18] sm:$0xff]
    %v2007 = vld [vmem:[#allocation8 + $0x20] sm:$0xff]
    %v2008 = vld [vmem:[#allocation8 + $0x28] sm:$0xff]
    %v2009 = vld [vmem:[#allocation8 + $0x30] sm:$0xff]
    %v2010 = vld [vmem:[#allocation8 + $0x38] sm:$0xff]
    %v2011 = vld [vmem:[#allocation8 + $0x40] sm:$0xff]
    %v2012 = vld [vmem:[#allocation8 + $0x48] sm:$0xff]
    %v2013 = vld [vmem:[#allocation8 + $0x50] sm:$0xff]
    %v2014 = vld [vmem:[#allocation8 + $0x58] sm:$0xff]
    %v2015 = vld [vmem:[#allocation8 + $0x60] sm:$0xff]
    %v2016 = vld [vmem:[#allocation8 + $0x68] sm:$0xff]
    %v2017 = vld [vmem:[#allocation8 + $0x70] sm:$0xff]
    %v2018 = vld [vmem:[#allocation8 + $0x78] sm:$0xff]
    %v2019 = vld [vmem:[#allocation8 + $0x80] sm:$0xff]
    %v2020 = vld [vmem:[#allocation8 + $0x88] sm:$0xff]
    %v2021 = vld [vmem:[#allocation8 + $0x90] sm:$0xff]
    %v2022 = vld [vmem:[#allocation8 + $0x98] sm:$0xff]
    %v2023 = vld [vmem:[#allocation8 + $0xa0] sm:$0xff]
    %v2024 = vld [vmem:[#allocation8 + $0xa8] sm:$0xff]
    %v2025 = vld [vmem:[#allocation8 + $0xb0] sm:$0xff]
    %v2026 = vld [vmem:[#allocation8 + $0xb8] sm:$0xff]
    %v2027 = vld [vmem:[#allocation8 + $0xc0] sm:$0xff]
    %v2028 = vld [vmem:[#allocation8 + $0xc8] sm:$0xff]
    %v2029 = vld [vmem:[#allocation8 + $0xd0] sm:$0xff]
    %v2030 = vld [vmem:[#allocation8 + $0xd8] sm:$0xff]
    %v2031 = vld [vmem:[#allocation8 + $0xe0] sm:$0xff]
    %v2032 = vld [vmem:[#allocation8 + $0xe8] sm:$0xff]
    %v2033 = vld [vmem:[#allocation8 + $0xf0] sm:$0xff]
    %v2034 = vld [vmem:[#allocation8 + $0xf8] sm:$0xff]
    %v2035 = vld [vmem:[%s6] sm:$0x3]
    %v2037 = vlaneseq
    %v2038 = vshrl.u32 %v2037, 7
    %v2039 = vsub.s32 0, %v2038
    %v2040 = vrot.slane %v2035, %v2039
    %v2041 = vlaneseq
    %v2042 = vshrl.u32 %v2041, 7
    %v2043 = vsub.s32 1, %v2042
    %v2044 = vrot.slane %v2035, %v2043
    %v2079 = vunpack.c.l.b16 %v2003
    %v2080 = vunpack.c.h.b16 %v2003
    %v2081 = vunpack.c.l.b16 %v2004
    %v2082 = vunpack.c.h.b16 %v2004
    %v2083 = vunpack.c.l.b16 %v2005
    %v2084 = vunpack.c.h.b16 %v2005
    %v2085 = vunpack.c.l.b16 %v2006
    %v2086 = vunpack.c.h.b16 %v2006
    %v2087 = vunpack.c.l.b16 %v2007
    %v2088 = vunpack.c.h.b16 %v2007
    %v2089 = vunpack.c.l.b16 %v2008
    %v2090 = vunpack.c.h.b16 %v2008
    %v2091 = vunpack.c.l.b16 %v2009
    %v2092 = vunpack.c.h.b16 %v2009
    %v2093 = vunpack.c.l.b16 %v2010
    %v2094 = vunpack.c.h.b16 %v2010
    %v2095 = vunpack.c.l.b16 %v2011
    %v2096 = vunpack.c.h.b16 %v2011
    %v2097 = vunpack.c.l.b16 %v2012
    %v2098 = vunpack.c.h.b16 %v2012
    %v2099 = vunpack.c.l.b16 %v2013
    %v2100 = vunpack.c.h.b16 %v2013
    %v2101 = vunpack.c.l.b16 %v2014
    %v2102 = vunpack.c.h.b16 %v2014
    %v2103 = vunpack.c.l.b16 %v2015
    %v2104 = vunpack.c.h.b16 %v2015
    %v2105 = vunpack.c.l.b16 %v2016
    %v2106 = vunpack.c.h.b16 %v2016
    %v2107 = vunpack.c.l.b16 %v2017
    %v2108 = vunpack.c.h.b16 %v2017
    %v2109 = vunpack.c.l.b16 %v2018
    %v2110 = vunpack.c.h.b16 %v2018
    %v2111 = vunpack.c.l.b16 %v2019
    %v2112 = vunpack.c.h.b16 %v2019
    %v2113 = vunpack.c.l.b16 %v2020
    %v2114 = vunpack.c.h.b16 %v2020
    %v2115 = vunpack.c.l.b16 %v2021
    %v2116 = vunpack.c.h.b16 %v2021
    %v2117 = vunpack.c.l.b16 %v2022
    %v2118 = vunpack.c.h.b16 %v2022
    %v2119 = vunpack.c.l.b16 %v2023
    %v2120 = vunpack.c.h.b16 %v2023
    %v2121 = vunpack.c.l.b16 %v2024
    %v2122 = vunpack.c.h.b16 %v2024
    %v2123 = vunpack.c.l.b16 %v2025
    %v2124 = vunpack.c.h.b16 %v2025
    %v2125 = vunpack.c.l.b16 %v2026
    %v2126 = vunpack.c.h.b16 %v2026
    %v2127 = vunpack.c.l.b16 %v2027
    %v2128 = vunpack.c.h.b16 %v2027
    %v2129 = vunpack.c.l.b16 %v2028
    %v2130 = vunpack.c.h.b16 %v2028
    %v2131 = vunpack.c.l.b16 %v2029
    %v2132 = vunpack.c.h.b16 %v2029
    %v2133 = vunpack.c.l.b16 %v2030
    %v2134 = vunpack.c.h.b16 %v2030
    %v2135 = vunpack.c.l.b16 %v2031
    %v2136 = vunpack.c.h.b16 %v2031
    %v2137 = vunpack.c.l.b16 %v2032
    %v2138 = vunpack.c.h.b16 %v2032
    %v2139 = vunpack.c.l.b16 %v2033
    %v2140 = vunpack.c.h.b16 %v2033
    %v2141 = vunpack.c.l.b16 %v2034
    %v2142 = vunpack.c.h.b16 %v2034
    %v2143 = vpack.c.b16 %v2081, %v2079
    %v2144 = vpack.c.b16 %v2082, %v2080
    %v2145 = vpack.c.b16 %v2085, %v2083
    %v2146 = vpack.c.b16 %v2086, %v2084
    %v2147 = vpack.c.b16 %v2089, %v2087
    %v2148 = vpack.c.b16 %v2090, %v2088
    %v2149 = vpack.c.b16 %v2093, %v2091
    %v2150 = vpack.c.b16 %v2094, %v2092
    %v2151 = vpack.c.b16 %v2097, %v2095
    %v2152 = vpack.c.b16 %v2098, %v2096
    %v2153 = vpack.c.b16 %v2101, %v2099
    %v2154 = vpack.c.b16 %v2102, %v2100
    %v2155 = vpack.c.b16 %v2105, %v2103
    %v2156 = vpack.c.b16 %v2106, %v2104
    %v2157 = vpack.c.b16 %v2109, %v2107
    %v2158 = vpack.c.b16 %v2110, %v2108
    %v2159 = vpack.c.b16 %v2113, %v2111
    %v2160 = vpack.c.b16 %v2114, %v2112
    %v2161 = vpack.c.b16 %v2117, %v2115
    %v2162 = vpack.c.b16 %v2118, %v2116
    %v2163 = vpack.c.b16 %v2121, %v2119
    %v2164 = vpack.c.b16 %v2122, %v2120
    %v2165 = vpack.c.b16 %v2125, %v2123
    %v2166 = vpack.c.b16 %v2126, %v2124
    %v2167 = vpack.c.b16 %v2129, %v2127
    %v2168 = vpack.c.b16 %v2130, %v2128
    %v2169 = vpack.c.b16 %v2133, %v2131
    %v2170 = vpack.c.b16 %v2134, %v2132
    %v2171 = vpack.c.b16 %v2137, %v2135
    %v2172 = vpack.c.b16 %v2138, %v2136
    %v2173 = vpack.c.b16 %v2141, %v2139
    %v2174 = vpack.c.b16 %v2142, %v2140
    %2207 = vmatprep.subr.bf16.mxu0 %v2144
    %2208 = vmatpush1.bf16.msra.mxu0 %v2143
    %2209 = vmatprep.subr.bf16.mxu0 %v2146
    %2210 = vmatpush1.bf16.msra.mxu0 %v2145
    %2211 = vmatprep.subr.bf16.mxu0 %v2148
    %2212 = vmatpush1.bf16.msra.mxu0 %v2147
    %2213 = vmatprep.subr.bf16.mxu0 %v2150
    %2214 = vmatpush1.bf16.msra.mxu0 %v2149
    %2215 = vmatprep.subr.bf16.mxu0 %v2152
    %2216 = vmatpush1.bf16.msra.mxu0 %v2151
    %2217 = vmatprep.subr.bf16.mxu0 %v2154
    %2218 = vmatpush1.bf16.msra.mxu0 %v2153
    %2219 = vmatprep.subr.bf16.mxu0 %v2156
    %2220 = vmatpush1.bf16.msra.mxu0 %v2155
    %2221 = vmatprep.subr.bf16.mxu0 %v2158
    %2222 = vmatpush1.bf16.msra.mxu0 %v2157
    %2223 = vmatprep.subr.bf16.mxu0 %v2160
    %2224 = vmatpush1.bf16.msra.mxu0 %v2159
    %2225 = vmatprep.subr.bf16.mxu0 %v2162
    %2226 = vmatpush1.bf16.msra.mxu0 %v2161
    %2227 = vmatprep.subr.bf16.mxu0 %v2164
    %2228 = vmatpush1.bf16.msra.mxu0 %v2163
    %2229 = vmatprep.subr.bf16.mxu0 %v2166
    %2230 = vmatpush1.bf16.msra.mxu0 %v2165
    %2231 = vmatprep.subr.bf16.mxu0 %v2168
    %2232 = vmatpush1.bf16.msra.mxu0 %v2167
    %2233 = vmatprep.subr.bf16.mxu0 %v2170
    %2234 = vmatpush1.bf16.msra.mxu0 %v2169
    %2235 = vmatprep.subr.bf16.mxu0 %v2172
    %2236 = vmatpush1.bf16.msra.mxu0 %v2171
    %2237 = vmatprep.subr.bf16.mxu0 %v2174
    %2238 = vmatpush1.bf16.msra.mxu0 %v2173
    %2239 = vmatprep.mubr.bf16.mxu0 %v1988
    %2240 = vmatmul.mubr.bf16.gmra.mrb[0].mxu0 %v1987
    %v2241 = vpop.f32.mrb[0].mxu0
    %v2242 = vadd.f32 %v2040, %v2241
    %v2243 = vpop.f32.mrb[0].mxu0
    %v2244 = vadd.f32 %v2044, %v2243
    %v2245 = vpop.f32.mrb[0].mxu0
    %v2246 = vadd.f32 %v2040, %v2245
    %v2247 = vpop.f32.mrb[0].mxu0
    %v2248 = vadd.f32 %v2044, %v2247
    %2249 = vmatprep.mubr.bf16.mxu0 %v1990
    %2250 = vmatmul.mubr.bf16.gmra.mrb[0].mxu0 %v1989
    %v2251 = vpop.f32.mrb[0].mxu0
    %v2252 = vadd.f32 %v2040, %v2251
    %v2253 = vpop.f32.mrb[0].mxu0
    %v2254 = vadd.f32 %v2044, %v2253
    %v2255 = vpop.f32.mrb[0].mxu0
    %v2256 = vadd.f32 %v2040, %v2255
    %v2257 = vpop.f32.mrb[0].mxu0
    %v2258 = vadd.f32 %v2044, %v2257
    %2259 = vmatprep.mubr.bf16.mxu0 %v1992
    %2260 = vmatmul.mubr.bf16.gmra.mrb[0].mxu0 %v1991
    %v2261 = vpop.f32.mrb[0].mxu0
    %v2262 = vadd.f32 %v2040, %v2261
    %v2263 = vpop.f32.mrb[0].mxu0
    %v2264 = vadd.f32 %v2044, %v2263
    %v2265 = vpop.f32.mrb[0].mxu0
    %v2266 = vadd.f32 %v2040, %v2265
    %v2267 = vpop.f32.mrb[0].mxu0
    %v2268 = vadd.f32 %v2044, %v2267
    %2269 = vmatprep.mubr.bf16.mxu0 %v1994
    %2270 = vmatmul.mubr.bf16.gmra.mrb[0].mxu0 %v1993
    %v2271 = vpop.f32.mrb[0].mxu0
    %v2272 = vadd.f32 %v2040, %v2271
    %v2273 = vpop.f32.mrb[0].mxu0
    %v2274 = vadd.f32 %v2044, %v2273
    %v2275 = vpop.f32.mrb[0].mxu0
    %v2276 = vadd.f32 %v2040, %v2275
    %v2277 = vpop.f32.mrb[0].mxu0
    %v2278 = vadd.f32 %v2044, %v2277
    %2279 = vmatprep.mubr.bf16.mxu0 %v1996
    %2280 = vmatmul.mubr.bf16.gmra.mrb[0].mxu0 %v1995
    %v2281 = vpop.f32.mrb[0].mxu0
    %v2282 = vadd.f32 %v2040, %v2281
    %v2283 = vpop.f32.mrb[0].mxu0
    %v2284 = vadd.f32 %v2044, %v2283
    %v2285 = vpop.f32.mrb[0].mxu0
    %v2286 = vadd.f32 %v2040, %v2285
    %v2287 = vpop.f32.mrb[0].mxu0
    %v2288 = vadd.f32 %v2044, %v2287
    %2289 = vmatprep.mubr.bf16.mxu0 %v1998
    %2290 = vmatmul.mubr.bf16.gmra.mrb[0].mxu0 %v1997
    %v2291 = vpop.f32.mrb[0].mxu0
    %v2292 = vadd.f32 %v2040, %v2291
    %v2293 = vpop.f32.mrb[0].mxu0
    %v2294 = vadd.f32 %v2044, %v2293
    %v2295 = vpop.f32.mrb[0].mxu0
    %v2296 = vadd.f32 %v2040, %v2295
    %v2297 = vpop.f32.mrb[0].mxu0
    %v2298 = vadd.f32 %v2044, %v2297
    %2299 = vmatprep.mubr.bf16.mxu0 %v2000
    %2300 = vmatmul.mubr.bf16.gmra.mrb[0].mxu0 %v1999
    %v2301 = vpop.f32.mrb[0].mxu0
    %v2302 = vadd.f32 %v2040, %v2301
    %v2303 = vpop.f32.mrb[0].mxu0
    %v2304 = vadd.f32 %v2044, %v2303
    %v2305 = vpop.f32.mrb[0].mxu0
    %v2306 = vadd.f32 %v2040, %v2305
    %v2307 = vpop.f32.mrb[0].mxu0
    %v2308 = vadd.f32 %v2044, %v2307
    %2309 = vmatprep.mubr.bf16.mxu0 %v2002
    %2310 = vmatmul.mubr.bf16.gmra.mrb[0].mxu0 %v2001
    %v2311 = vpop.f32.mrb[0].mxu0
    %v2312 = vadd.f32 %v2040, %v2311
    %v2313 = vpop.f32.mrb[0].mxu0
    %v2314 = vadd.f32 %v2044, %v2313
    %v2315 = vpop.f32.mrb[0].mxu0
    %v2316 = vadd.f32 %v2040, %v2315
    %v2317 = vpop.f32.mrb[0].mxu0
    %v2318 = vadd.f32 %v2044, %v2317
    %2319 = vdwg.mxu0
    %v2320 = vmax.f32 %v2242, 0.0
    %v2321 = vmax.f32 %v2244, 0.0
    %v2322 = vmax.f32 %v2246, 0.0
    %v2323 = vmax.f32 %v2248, 0.0
    %v2324 = vmax.f32 %v2252, 0.0
    %v2325 = vmax.f32 %v2254, 0.0
    %v2326 = vmax.f32 %v2256, 0.0
    %v2327 = vmax.f32 %v2258, 0.0
    %v2328 = vmax.f32 %v2262, 0.0
    %v2329 = vmax.f32 %v2264, 0.0
    %v2330 = vmax.f32 %v2266, 0.0
    %v2331 = vmax.f32 %v2268, 0.0
    %v2332 = vmax.f32 %v2272, 0.0
    %v2333 = vmax.f32 %v2274, 0.0
    %v2334 = vmax.f32 %v2276, 0.0
    %v2335 = vmax.f32 %v2278, 0.0
    %v2336 = vmax.f32 %v2282, 0.0
    %v2337 = vmax.f32 %v2284, 0.0
    %v2338 = vmax.f32 %v2286, 0.0
    %v2339 = vmax.f32 %v2288, 0.0
    %v2340 = vmax.f32 %v2292, 0.0
    %v2341 = vmax.f32 %v2294, 0.0
    %v2342 = vmax.f32 %v2296, 0.0
    %v2343 = vmax.f32 %v2298, 0.0
    %v2344 = vmax.f32 %v2302, 0.0
    %v2345 = vmax.f32 %v2304, 0.0
    %v2346 = vmax.f32 %v2306, 0.0
    %v2347 = vmax.f32 %v2308, 0.0
    %v2348 = vmax.f32 %v2312, 0.0
    %v2349 = vmax.f32 %v2314, 0.0
    %v2350 = vmax.f32 %v2316, 0.0
    %v2351 = vmax.f32 %v2318, 0.0
    %v2352 = vpack.c.bf16 %v2322, %v2320
    %v2353 = vpack.c.bf16 %v2323, %v2321
    %v2354 = vpack.c.bf16 %v2326, %v2324
    %v2355 = vpack.c.bf16 %v2327, %v2325
    %v2356 = vpack.c.bf16 %v2330, %v2328
    %v2357 = vpack.c.bf16 %v2331, %v2329
    %v2358 = vpack.c.bf16 %v2334, %v2332
    %v2359 = vpack.c.bf16 %v2335, %v2333
    %v2360 = vpack.c.bf16 %v2338, %v2336
    %v2361 = vpack.c.bf16 %v2339, %v2337
    %v2362 = vpack.c.bf16 %v2342, %v2340
    %v2363 = vpack.c.bf16 %v2343, %v2341
    %v2364 = vpack.c.bf16 %v2346, %v2344
    %v2365 = vpack.c.bf16 %v2347, %v2345
    %v2366 = vpack.c.bf16 %v2350, %v2348
    %v2367 = vpack.c.bf16 %v2351, %v2349
    %v2368 = vld [vmem:[#allocation10] sm:$0xf]
    %v2369 = vld [vmem:[#allocation10 + $0x4] sm:$0xf]
    %v2370 = vld [vmem:[#allocation10 + $0x8] sm:$0xf]
    %v2371 = vld [vmem:[#allocation10 + $0xc] sm:$0xf]
    %v2372 = vld [vmem:[#allocation10 + $0x10] sm:$0xf]
    %v2373 = vld [vmem:[#allocation10 + $0x14] sm:$0xf]
    %v2374 = vld [vmem:[#allocation10 + $0x18] sm:$0xf]
    %v2375 = vld [vmem:[#allocation10 + $0x1c] sm:$0xf]
    %v2376 = vld [vmem:[#allocation10 + $0x20] sm:$0xf]
    %v2377 = vld [vmem:[#allocation10 + $0x24] sm:$0xf]
    %v2378 = vld [vmem:[#allocation10 + $0x28] sm:$0xf]
    %v2379 = vld [vmem:[#allocation10 + $0x2c] sm:$0xf]
    %v2380 = vld [vmem:[#allocation10 + $0x30] sm:$0xf]
    %v2381 = vld [vmem:[#allocation10 + $0x34] sm:$0xf]
    %v2382 = vld [vmem:[#allocation10 + $0x38] sm:$0xf]
    %v2383 = vld [vmem:[#allocation10 + $0x3c] sm:$0xf]
    %v2384 = vld [vmem:[#allocation10 + $0x40] sm:$0xf]
    %v2385 = vld [vmem:[#allocation10 + $0x44] sm:$0xf]
    %v2386 = vld [vmem:[#allocation10 + $0x48] sm:$0xf]
    %v2387 = vld [vmem:[#allocation10 + $0x4c] sm:$0xf]
    %v2388 = vld [vmem:[#allocation10 + $0x50] sm:$0xf]
    %v2389 = vld [vmem:[#allocation10 + $0x54] sm:$0xf]
    %v2390 = vld [vmem:[#allocation10 + $0x58] sm:$0xf]
    %v2391 = vld [vmem:[#allocation10 + $0x5c] sm:$0xf]
    %v2392 = vld [vmem:[#allocation10 + $0x60] sm:$0xf]
    %v2393 = vld [vmem:[#allocation10 + $0x64] sm:$0xf]
    %v2394 = vld [vmem:[#allocation10 + $0x68] sm:$0xf]
    %v2395 = vld [vmem:[#allocation10 + $0x6c] sm:$0xf]
    %v2396 = vld [vmem:[#allocation10 + $0x70] sm:$0xf]
    %v2397 = vld [vmem:[#allocation10 + $0x74] sm:$0xf]
    %v2398 = vld [vmem:[#allocation10 + $0x78] sm:$0xf]
    %v2399 = vld [vmem:[#allocation10 + $0x7c] sm:$0xf]
    %v2400 = vld [vmem:[%s8] sm:$0x1]
    %v2402 = vlaneseq
    %v2403 = vshrl.u32 %v2402, 7
    %v2404 = vsub.s32 0, %v2403
    %v2405 = vrot.slane %v2400, %v2404
    %v2439 = vunpack.c.l.b16 %v2368
    %v2440 = vunpack.c.l.b16 %v2369
    %v2441 = vunpack.c.l.b16 %v2370
    %v2442 = vunpack.c.l.b16 %v2371
    %v2443 = vunpack.c.l.b16 %v2372
    %v2444 = vunpack.c.l.b16 %v2373
    %v2445 = vunpack.c.l.b16 %v2374
    %v2446 = vunpack.c.l.b16 %v2375
    %v2447 = vunpack.c.l.b16 %v2376
    %v2448 = vunpack.c.l.b16 %v2377
    %v2449 = vunpack.c.l.b16 %v2378
    %v2450 = vunpack.c.l.b16 %v2379
    %v2451 = vunpack.c.l.b16 %v2380
    %v2452 = vunpack.c.l.b16 %v2381
    %v2453 = vunpack.c.l.b16 %v2382
    %v2454 = vunpack.c.l.b16 %v2383
    %v2455 = vunpack.c.l.b16 %v2384
    %v2456 = vunpack.c.l.b16 %v2385
    %v2457 = vunpack.c.l.b16 %v2386
    %v2458 = vunpack.c.l.b16 %v2387
    %v2459 = vunpack.c.l.b16 %v2388
    %v2460 = vunpack.c.l.b16 %v2389
    %v2461 = vunpack.c.l.b16 %v2390
    %v2462 = vunpack.c.l.b16 %v2391
    %v2463 = vunpack.c.l.b16 %v2392
    %v2464 = vunpack.c.l.b16 %v2393
    %v2465 = vunpack.c.l.b16 %v2394
    %v2466 = vunpack.c.l.b16 %v2395
    %v2467 = vunpack.c.l.b16 %v2396
    %v2468 = vunpack.c.l.b16 %v2397
    %v2469 = vunpack.c.l.b16 %v2398
    %v2470 = vunpack.c.l.b16 %v2399
    %v2471 = vpack.c.b16 %v2440, %v2439
    %v2472 = vpack.c.b16 %v2442, %v2441
    %v2473 = vpack.c.b16 %v2444, %v2443
    %v2474 = vpack.c.b16 %v2446, %v2445
    %v2475 = vpack.c.b16 %v2448, %v2447
    %v2476 = vpack.c.b16 %v2450, %v2449
    %v2477 = vpack.c.b16 %v2452, %v2451
    %v2478 = vpack.c.b16 %v2454, %v2453
    %v2479 = vpack.c.b16 %v2456, %v2455
    %v2480 = vpack.c.b16 %v2458, %v2457
    %v2481 = vpack.c.b16 %v2460, %v2459
    %v2482 = vpack.c.b16 %v2462, %v2461
    %v2483 = vpack.c.b16 %v2464, %v2463
    %v2484 = vpack.c.b16 %v2466, %v2465
    %v2485 = vpack.c.b16 %v2468, %v2467
    %v2486 = vpack.c.b16 %v2470, %v2469
    %2503 = vmatprep.subr.bf16.mxu0 0
    %2504 = vmatpush1.bf16.msra.mxu0 %v2471
    %2505 = vmatprep.subr.bf16.mxu0 0
    %2506 = vmatpush1.bf16.msra.mxu0 %v2472
    %2507 = vmatprep.subr.bf16.mxu0 0
    %2508 = vmatpush1.bf16.msra.mxu0 %v2473
    %2509 = vmatprep.subr.bf16.mxu0 0
    %2510 = vmatpush1.bf16.msra.mxu0 %v2474
    %2511 = vmatprep.subr.bf16.mxu0 0
    %2512 = vmatpush1.bf16.msra.mxu0 %v2475
    %2513 = vmatprep.subr.bf16.mxu0 0
    %2514 = vmatpush1.bf16.msra.mxu0 %v2476
    %2515 = vmatprep.subr.bf16.mxu0 0
    %2516 = vmatpush1.bf16.msra.mxu0 %v2477
    %2517 = vmatprep.subr.bf16.mxu0 0
    %2518 = vmatpush1.bf16.msra.mxu0 %v2478
    %2519 = vmatprep.subr.bf16.mxu0 0
    %2520 = vmatpush1.bf16.msra.mxu0 %v2479
    %2521 = vmatprep.subr.bf16.mxu0 0
    %2522 = vmatpush1.bf16.msra.mxu0 %v2480
    %2523 = vmatprep.subr.bf16.mxu0 0
    %2524 = vmatpush1.bf16.msra.mxu0 %v2481
    %2525 = vmatprep.subr.bf16.mxu0 0
    %2526 = vmatpush1.bf16.msra.mxu0 %v2482
    %2527 = vmatprep.subr.bf16.mxu0 0
    %2528 = vmatpush1.bf16.msra.mxu0 %v2483
    %2529 = vmatprep.subr.bf16.mxu0 0
    %2530 = vmatpush1.bf16.msra.mxu0 %v2484
    %2531 = vmatprep.subr.bf16.mxu0 0
    %2532 = vmatpush1.bf16.msra.mxu0 %v2485
    %2533 = vmatprep.subr.bf16.mxu0 0
    %2534 = vmatpush1.bf16.msra.mxu0 %v2486
    %2535 = vmatprep.mubr.bf16.mxu0 %v2353
    %2536 = vmatmul.mubr.bf16.gmra.mrb[0].mxu0 %v2352
    %v2537 = vpop.f32.mrb[0].mxu0
    %v2538 = vadd.f32 %v2405, %v2537
    %v2539 = vpop.f32.mrb[0].mxu0
    %v2540 = vpop.f32.mrb[0].mxu0
    %v2541 = vadd.f32 %v2405, %v2540
    %v2542 = vpop.f32.mrb[0].mxu0
    %2543 = vmatprep.mubr.bf16.mxu0 %v2355
    %2544 = vmatmul.mubr.bf16.gmra.mrb[0].mxu0 %v2354
    %v2545 = vpop.f32.mrb[0].mxu0
    %v2546 = vadd.f32 %v2405, %v2545
    %v2547 = vpop.f32.mrb[0].mxu0
    %v2548 = vpop.f32.mrb[0].mxu0
    %v2549 = vadd.f32 %v2405, %v2548
    %v2550 = vpop.f32.mrb[0].mxu0
    %2551 = vmatprep.mubr.bf16.mxu0 %v2357
    %2552 = vmatmul.mubr.bf16.gmra.mrb[0].mxu0 %v2356
    %v2553 = vpop.f32.mrb[0].mxu0
    %v2554 = vadd.f32 %v2405, %v2553
    %v2555 = vpop.f32.mrb[0].mxu0
    %v2556 = vpop.f32.mrb[0].mxu0
    %v2557 = vadd.f32 %v2405, %v2556
    %v2558 = vpop.f32.mrb[0].mxu0
    %2559 = vmatprep.mubr.bf16.mxu0 %v2359
    %2560 = vmatmul.mubr.bf16.gmra.mrb[0].mxu0 %v2358
    %v2561 = vpop.f32.mrb[0].mxu0
    %v2562 = vadd.f32 %v2405, %v2561
    %v2563 = vpop.f32.mrb[0].mxu0
    %v2564 = vpop.f32.mrb[0].mxu0
    %v2565 = vadd.f32 %v2405, %v2564
    %v2566 = vpop.f32.mrb[0].mxu0
    %2567 = vmatprep.mubr.bf16.mxu0 %v2361
    %2568 = vmatmul.mubr.bf16.gmra.mrb[0].mxu0 %v2360
    %v2569 = vpop.f32.mrb[0].mxu0
    %v2570 = vadd.f32 %v2405, %v2569
    %v2571 = vpop.f32.mrb[0].mxu0
    %v2572 = vpop.f32.mrb[0].mxu0
    %v2573 = vadd.f32 %v2405, %v2572
    %v2574 = vpop.f32.mrb[0].mxu0
    %2575 = vmatprep.mubr.bf16.mxu0 %v2363
    %2576 = vmatmul.mubr.bf16.gmra.mrb[0].mxu0 %v2362
    %v2577 = vpop.f32.mrb[0].mxu0
    %v2578 = vadd.f32 %v2405, %v2577
    %v2579 = vpop.f32.mrb[0].mxu0
    %v2580 = vpop.f32.mrb[0].mxu0
    %v2581 = vadd.f32 %v2405, %v2580
    %v2582 = vpop.f32.mrb[0].mxu0
    %2583 = vmatprep.mubr.bf16.mxu0 %v2365
    %2584 = vmatmul.mubr.bf16.gmra.mrb[0].mxu0 %v2364
    %v2585 = vpop.f32.mrb[0].mxu0
    %v2586 = vadd.f32 %v2405, %v2585
    %v2587 = vpop.f32.mrb[0].mxu0
    %v2588 = vpop.f32.mrb[0].mxu0
    %v2589 = vadd.f32 %v2405, %v2588
    %v2590 = vpop.f32.mrb[0].mxu0
    %2591 = vmatprep.mubr.bf16.mxu0 %v2367
    %2592 = vmatmul.mubr.bf16.gmra.mrb[0].mxu0 %v2366
    %v2593 = vpop.f32.mrb[0].mxu0
    %v2594 = vadd.f32 %v2405, %v2593
    %v2595 = vpop.f32.mrb[0].mxu0
    %v2596 = vpop.f32.mrb[0].mxu0
    %v2597 = vadd.f32 %v2405, %v2596
    %v2598 = vpop.f32.mrb[0].mxu0
    %2599 = vdwg.mxu0
    %2600 = vst [vmem:[#allocation11] sm:$0xff] %v2538
    %2601 = vst [vmem:[#allocation11 + $0x8] sm:$0xff] %v2541
    %2602 = vst [vmem:[#allocation11 + $0x10] sm:$0xff] %v2546
    %2603 = vst [vmem:[#allocation11 + $0x18] sm:$0xff] %v2549
    %2604 = vst [vmem:[#allocation11 + $0x20] sm:$0xff] %v2554
    %2605 = vst [vmem:[#allocation11 + $0x28] sm:$0xff] %v2557
    %2606 = vst [vmem:[#allocation11 + $0x30] sm:$0xff] %v2562
    %2607 = vst [vmem:[#allocation11 + $0x38] sm:$0xff] %v2565
    %2608 = vst [vmem:[#allocation11 + $0x40] sm:$0xff] %v2570
    %2609 = vst [vmem:[#allocation11 + $0x48] sm:$0xff] %v2573
    %2610 = vst [vmem:[#allocation11 + $0x50] sm:$0xff] %v2578
    %2611 = vst [vmem:[#allocation11 + $0x58] sm:$0xff] %v2581
    %2612 = vst [vmem:[#allocation11 + $0x60] sm:$0xff] %v2586
    %2613 = vst [vmem:[#allocation11 + $0x68] sm:$0xff] %v2589
    %2614 = vst [vmem:[#allocation11 + $0x70] sm:$0xff] %v2594
    %2615 = vst [vmem:[#allocation11 + $0x78] sm:$0xff] %v2597
    // Predicated region
    $region58: #{tpu_custom_call.1} parent=1 // pred_check
      _
    $region59: #{tpu_custom_call.1} parent=1 // pred_check_branch
      %2617 = sbr.rel (0) target = $region61
    $region60: #{tpu_custom_call.1} parent=1 // pred_region
      %s2619 = ssub.s32 2048, 2048
      %2620 = vsyncadd [#allocation4], %s2619
      %s2621 = sshll.u32 [#allocation11], 4
      %s2622 = int_to_ptr.vmem [resolvable:$true] %s2621
      %2627 = dma.vmem_to_hbm [thread:$0]  %s2622, 2048, %s9, [#allocation4], 128, 128, 8
    $region61: #{tpu_custom_call.1} parent=1 // pred_fallthru
      _
    // Predicated region
    $region62: #{tpu_custom_call.1} parent=1 // pred_check
      _
    $region63: #{tpu_custom_call.1} parent=1 // pred_check_branch
      %2629 = sbr.rel (0) target = $region65
    $region64: #{tpu_custom_call.1} parent=1 // pred_region
      %2630 = dma.done [#allocation4], 2048
    $region65: #{tpu_custom_call.1} parent=1 // pred_fallthru
      _
    %2631 = vsyncpa [#allocation3], 1
    %2632 = vsyncpa [#allocation6], 1
    %2633 = vsyncpa [#allocation9], 1
    %2634 = vsyncpa [#allocation4], 1

</llo_original>
